<compile_context>
chip_gen: v7x
topology: tpu7x:2x2x1
jax: 0.10.0
libtpu: 0.0.40
codegen_flags: <defaults>
</compile_context>

<pallas_src>
import jax
import jax.numpy as jnp
from jax import lax
from jax.experimental import pallas as pl
from jax.experimental.pallas import tpu as pltpu

N, H, W = 2, 8, 8
C = 32                      # conv1..conv3 width; conv4 maps 32 -> 1


def edge_kernel(x_ref, w1_ref, b1_ref, w2_ref, b2_ref, w3_ref, b3_ref,
                w4_ref, b4_ref, out_ref, im_ref):
    f32 = jnp.float32

    # Zero the im2col scratch once per program.  The border strips of each
    # (dy, dx) block are never overwritten below, so they stay zero for all
    # three convolutions.
    im_ref[...] = jnp.zeros((H, W, 9 * C), f32)

    def conv3x3_relu(v, w_ref_, b_ref_):
        # v: (H, W, C) value.  Scatter the 9 shifted windows into the im2col
        # scratch (interior/valid region only), then do ONE K=288 matmul.
        for dy in range(3):
            h_lo, h_hi = max(0, 1 - dy), min(H, H + 1 - dy)
            for dx in range(3):
                w_lo, w_hi = max(0, 1 - dx), min(W, W + 1 - dx)
                t = dy * 3 + dx
                im_ref[h_lo:h_hi, w_lo:w_hi, t * C:(t + 1) * C] = (
                    v[h_lo + dy - 1:h_hi + dy - 1,
                      w_lo + dx - 1:w_hi + dx - 1, :])
        im = im_ref[...].reshape(H * W, 9 * C)              # (64, 288)
        y = jnp.dot(im, w_ref_[...], preferred_element_type=f32)
        return jnp.maximum(y + b_ref_[...], 0.0)            # (64, 32)

    x = x_ref[0].astype(f32)                                # (H, W, C)
    y = conv3x3_relu(x, w1_ref, b1_ref)
    y = conv3x3_relu(y.reshape(H, W, C), w2_ref, b2_ref)
    y = conv3x3_relu(y.reshape(H, W, C), w3_ref, b3_ref)

    # conv4: 1x1, 32 -> 1, + bias, then sigmoid.
    z = jnp.dot(y, w4_ref[...], preferred_element_type=f32) + b4_ref[...]
    out_ref[...] = 1.0 / (1.0 + jnp.exp(-z))                # (64, 1)


def edge_forward(x, params):
    """x: (N, H, W, 32) f32.  params: HWIO weights + flat biases."""
    w1, b1, w2, b2, w3, b3, w4, b4 = params
    kw = lambda w: w.reshape(9 * C, C)      # (3,3,Cin,Cout) -> (9*Cin, Cout)
    kb = lambda b: b.reshape(1, -1)

    def const_spec(shape):
        return pl.BlockSpec(shape, lambda n, _s=shape: (0,) * len(_s))

    out2d = pl.pallas_call(
        edge_kernel,
        out_shape=jax.ShapeDtypeStruct((N * H * W, 1), jnp.float32),
        grid=(N,),
        in_specs=[
            pl.BlockSpec((1, H, W, C), lambda n: (n, 0, 0, 0)),   # x
            const_spec((9 * C, C)), const_spec((1, C)),           # conv1
            const_spec((9 * C, C)), const_spec((1, C)),           # conv2
            const_spec((9 * C, C)), const_spec((1, C)),           # conv3
            const_spec((C, 1)), const_spec((1, 1)),               # conv4
        ],
        out_specs=pl.BlockSpec((H * W, 1), lambda n: (n, 0)),
        scratch_shapes=[pltpu.VMEM((H, W, 9 * C), jnp.float32)],  # im2col buf
        compiler_params=pltpu.CompilerParams(
            dimension_semantics=("parallel",)),
    )(x, kw(w1), kb(b1), kw(w2), kb(b2), kw(w3), kb(b3),
      w4.reshape(C, 1), b4.reshape(1, 1))
    return out2d.reshape(N, H, W, 1)


# ---------------- deterministic parameter init (synthetic) ----------------
def init_params(key):
    ks = jax.random.split(key, 8)

    def w_init(k, shape, fan_in):
        return jax.random.normal(k, shape, jnp.float32) / jnp.sqrt(float(fan_in))

    w1 = w_init(ks[0], (3, 3, C, C), 9 * C)   # Conv2d(32,32,3,padding=1)
    w2 = w_init(ks[1], (3, 3, C, C), 9 * C)
    w3 = w_init(ks[2], (3, 3, C, C), 9 * C)
    w4 = w_init(ks[3], (1, 1, C, 1), C)       # Conv2d(32,1,1)
    b1 = 0.1 * jax.random.normal(ks[4], (C,), jnp.float32)
    b2 = 0.1 * jax.random.normal(ks[5], (C,), jnp.float32)
    b3 = 0.1 * jax.random.normal(ks[6], (C,), jnp.float32)
    b4 = 0.1 * jax.random.normal(ks[7], (1,), jnp.float32)
    return (w1, b1, w2, b2, w3, b3, w4, b4)


# ---------------- pure-JAX reference for verification ----------------
def reference(x, params):
    w1, b1, w2, b2, w3, b3, w4, b4 = params
    dn = ("NHWC", "HWIO", "NHWC")
    same = [(1, 1), (1, 1)]

    def conv(v, w, pad):
        return lax.conv_general_dilated(v, w, (1, 1), pad, dimension_numbers=dn)

    y = jax.nn.relu(conv(x, w1, same) + b1)
    y = jax.nn.relu(conv(y, w2, same) + b2)
    y = jax.nn.relu(conv(y, w3, same) + b3)
    z = conv(y, w4, "VALID") + b4
    return jax.nn.sigmoid(z)


if __name__ == "__main__":
    key = jax.random.PRNGKey(0)
    kx, kp = jax.random.split(key)
    # NHWC input; equivalent to PyTorch NCHW input of shape (2, 32, 8, 8).
    x = jax.random.normal(kx, (N, H, W, C), jnp.float32)
    params = init_params(kp)

    out = jax.block_until_ready(edge_forward(x, params))
    assert out.shape == (N, H, W, 1)

    ref = reference(x, params)
    err = float(jnp.max(jnp.abs(out - ref)))
    assert err < 1e-3, f"max abs error {err}"
    print("KERNEL_OK")
</pallas_src>

<mosaic_0001>
module attributes {stable_mosaic.version = 11 : i64} {
  func.func @edge_kernel(%arg0: i32, %arg1: memref<1x8x8x32xf32, #tpu.memory_space<vmem>>, %arg2: memref<288x32xf32, #tpu.memory_space<vmem>>, %arg3: memref<1x32xf32, #tpu.memory_space<vmem>>, %arg4: memref<288x32xf32, #tpu.memory_space<vmem>>, %arg5: memref<1x32xf32, #tpu.memory_space<vmem>>, %arg6: memref<288x32xf32, #tpu.memory_space<vmem>>, %arg7: memref<1x32xf32, #tpu.memory_space<vmem>>, %arg8: memref<32x1xf32, #tpu.memory_space<vmem>>, %arg9: memref<1x1xf32, #tpu.memory_space<vmem>>, %arg10: memref<64x1xf32, #tpu.memory_space<vmem>>, %arg11: memref<8x8x288xf32, #tpu.memory_space<vmem>>) attributes {dimension_semantics = [#tpu.dimension_semantics<parallel>], iteration_bounds = array<i64: 2>, scalar_prefetch = 0 : i64, scratch_operands = 1 : i64, tpu.core_type = #tpu.core_type<tc>, window_params = [{transform_indices = @transform_0, window_bounds = array<i64: 1, 8, 8, 32>}, {pipeline_mode = #tpu.pipeline_mode<synchronous>, transform_indices = @transform_1, window_bounds = array<i64: 288, 32>}, {pipeline_mode = #tpu.pipeline_mode<synchronous>, transform_indices = @transform_2, window_bounds = array<i64: 1, 32>}, {pipeline_mode = #tpu.pipeline_mode<synchronous>, transform_indices = @transform_3, window_bounds = array<i64: 288, 32>}, {pipeline_mode = #tpu.pipeline_mode<synchronous>, transform_indices = @transform_4, window_bounds = array<i64: 1, 32>}, {pipeline_mode = #tpu.pipeline_mode<synchronous>, transform_indices = @transform_5, window_bounds = array<i64: 288, 32>}, {pipeline_mode = #tpu.pipeline_mode<synchronous>, transform_indices = @transform_6, window_bounds = array<i64: 1, 32>}, {pipeline_mode = #tpu.pipeline_mode<synchronous>, transform_indices = @transform_7, window_bounds = array<i64: 32, 1>}, {pipeline_mode = #tpu.pipeline_mode<synchronous>, transform_indices = @transform_8, window_bounds = array<i64: 1, 1>}, {transform_indices = @transform_9, window_bounds = array<i64: 64, 1>}]} {
    %cst = arith.constant 0.000000e+00 : f32
    %0 = vector.broadcast %cst : f32 to vector<8x8x288xf32>
    %c0 = arith.constant 0 : index
    %c0_0 = arith.constant 0 : index
    %c0_1 = arith.constant 0 : index
    %1 = vector.load %arg11[%c0, %c0_0, %c0_1] : memref<8x8x288xf32, #tpu.memory_space<vmem>>, vector<8x8x288xf32>
    tpu.vector_store %arg11[%c0, %c0_0, %c0_1], %0 {strides = array<i32>} : memref<8x8x288xf32, #tpu.memory_space<vmem>>, vector<8x8x288xf32>,
    %c0_2 = arith.constant 0 : index
    %c0_3 = arith.constant 0 : index
    %c0_4 = arith.constant 0 : index
    %c0_5 = arith.constant 0 : index
    %2 = vector.load %arg1[%c0_2, %c0_3, %c0_4, %c0_5] : memref<1x8x8x32xf32, #tpu.memory_space<vmem>>, vector<1x8x8x32xf32>
    %3 = vector.shape_cast %2 : vector<1x8x8x32xf32> to vector<8x8x32xf32>
    %4 = vector.extract_strided_slice %3 {offsets = [0, 0, 0], sizes = [7, 7, 32], strides = [1, 1, 1]} : vector<8x8x32xf32> to vector<7x7x32xf32>
    %c1 = arith.constant 1 : index
    %c1_6 = arith.constant 1 : index
    %c0_7 = arith.constant 0 : index
    %5 = vector.load %arg11[%c1, %c1_6, %c0_7] : memref<8x8x288xf32, #tpu.memory_space<vmem>>, vector<7x7x32xf32>
    tpu.vector_store %arg11[%c1, %c1_6, %c0_7], %4 {strides = array<i32>} : memref<8x8x288xf32, #tpu.memory_space<vmem>>, vector<7x7x32xf32>,
    %6 = vector.extract_strided_slice %3 {offsets = [0, 0, 0], sizes = [7, 8, 32], strides = [1, 1, 1]} : vector<8x8x32xf32> to vector<7x8x32xf32>
    %c1_8 = arith.constant 1 : index
    %c0_9 = arith.constant 0 : index
    %c32 = arith.constant 32 : index
    %7 = vector.load %arg11[%c1_8, %c0_9, %c32] : memref<8x8x288xf32, #tpu.memory_space<vmem>>, vector<7x8x32xf32>
    tpu.vector_store %arg11[%c1_8, %c0_9, %c32], %6 {strides = array<i32>} : memref<8x8x288xf32, #tpu.memory_space<vmem>>, vector<7x8x32xf32>,
    %8 = vector.extract_strided_slice %3 {offsets = [0, 1, 0], sizes = [7, 7, 32], strides = [1, 1, 1]} : vector<8x8x32xf32> to vector<7x7x32xf32>
    %c1_10 = arith.constant 1 : index
    %c0_11 = arith.constant 0 : index
    %c64 = arith.constant 64 : index
    %9 = vector.load %arg11[%c1_10, %c0_11, %c64] : memref<8x8x288xf32, #tpu.memory_space<vmem>>, vector<7x7x32xf32>
    tpu.vector_store %arg11[%c1_10, %c0_11, %c64], %8 {strides = array<i32>} : memref<8x8x288xf32, #tpu.memory_space<vmem>>, vector<7x7x32xf32>,
    %10 = vector.extract_strided_slice %3 {offsets = [0, 0, 0], sizes = [8, 7, 32], strides = [1, 1, 1]} : vector<8x8x32xf32> to vector<8x7x32xf32>
    %c0_12 = arith.constant 0 : index
    %c1_13 = arith.constant 1 : index
    %c96 = arith.constant 96 : index
    %11 = vector.load %arg11[%c0_12, %c1_13, %c96] : memref<8x8x288xf32, #tpu.memory_space<vmem>>, vector<8x7x32xf32>
    tpu.vector_store %arg11[%c0_12, %c1_13, %c96], %10 {strides = array<i32>} : memref<8x8x288xf32, #tpu.memory_space<vmem>>, vector<8x7x32xf32>,
    %c0_14 = arith.constant 0 : index
    %c0_15 = arith.constant 0 : index
    %c128 = arith.constant 128 : index
    %12 = vector.load %arg11[%c0_14, %c0_15, %c128] : memref<8x8x288xf32, #tpu.memory_space<vmem>>, vector<8x8x32xf32>
    tpu.vector_store %arg11[%c0_14, %c0_15, %c128], %3 {strides = array<i32>} : memref<8x8x288xf32, #tpu.memory_space<vmem>>, vector<8x8x32xf32>,
    %13 = vector.extract_strided_slice %3 {offsets = [0, 1, 0], sizes = [8, 7, 32], strides = [1, 1, 1]} : vector<8x8x32xf32> to vector<8x7x32xf32>
    %c0_16 = arith.constant 0 : index
    %c0_17 = arith.constant 0 : index
    %c160 = arith.constant 160 : index
    %14 = vector.load %arg11[%c0_16, %c0_17, %c160] : memref<8x8x288xf32, #tpu.memory_space<vmem>>, vector<8x7x32xf32>
    tpu.vector_store %arg11[%c0_16, %c0_17, %c160], %13 {strides = array<i32>} : memref<8x8x288xf32, #tpu.memory_space<vmem>>, vector<8x7x32xf32>,
    %15 = vector.extract_strided_slice %3 {offsets = [1, 0, 0], sizes = [7, 7, 32], strides = [1, 1, 1]} : vector<8x8x32xf32> to vector<7x7x32xf32>
    %c0_18 = arith.constant 0 : index
    %c1_19 = arith.constant 1 : index
    %c192 = arith.constant 192 : index
    %16 = vector.load %arg11[%c0_18, %c1_19, %c192] : memref<8x8x288xf32, #tpu.memory_space<vmem>>, vector<7x7x32xf32>
    tpu.vector_store %arg11[%c0_18, %c1_19, %c192], %15 {strides = array<i32>} : memref<8x8x288xf32, #tpu.memory_space<vmem>>, vector<7x7x32xf32>,
    %17 = vector.extract_strided_slice %3 {offsets = [1, 0, 0], sizes = [7, 8, 32], strides = [1, 1, 1]} : vector<8x8x32xf32> to vector<7x8x32xf32>
    %c0_20 = arith.constant 0 : index
    %c0_21 = arith.constant 0 : index
    %c224 = arith.constant 224 : index
    %18 = vector.load %arg11[%c0_20, %c0_21, %c224] : memref<8x8x288xf32, #tpu.memory_space<vmem>>, vector<7x8x32xf32>
    tpu.vector_store %arg11[%c0_20, %c0_21, %c224], %17 {strides = array<i32>} : memref<8x8x288xf32, #tpu.memory_space<vmem>>, vector<7x8x32xf32>,
    %19 = vector.extract_strided_slice %3 {offsets = [1, 1, 0], sizes = [7, 7, 32], strides = [1, 1, 1]} : vector<8x8x32xf32> to vector<7x7x32xf32>
    %c0_22 = arith.constant 0 : index
    %c0_23 = arith.constant 0 : index
    %c256 = arith.constant 256 : index
    %20 = vector.load %arg11[%c0_22, %c0_23, %c256] : memref<8x8x288xf32, #tpu.memory_space<vmem>>, vector<7x7x32xf32>
    tpu.vector_store %arg11[%c0_22, %c0_23, %c256], %19 {strides = array<i32>} : memref<8x8x288xf32, #tpu.memory_space<vmem>>, vector<7x7x32xf32>,
    %c0_24 = arith.constant 0 : index
    %c0_25 = arith.constant 0 : index
    %c0_26 = arith.constant 0 : index
    %21 = vector.load %arg11[%c0_24, %c0_25, %c0_26] : memref<8x8x288xf32, #tpu.memory_space<vmem>>, vector<8x8x288xf32>
    %22 = vector.shape_cast %21 : vector<8x8x288xf32> to vector<64x288xf32>
    %c0_27 = arith.constant 0 : index
    %c0_28 = arith.constant 0 : index
    %23 = vector.load %arg2[%c0_27, %c0_28] : memref<288x32xf32, #tpu.memory_space<vmem>>, vector<288x32xf32>
    %cst_29 = arith.constant dense<0.000000e+00> : vector<64x32xf32>
    %24 = tpu.matmul %22, %23, %cst_29 {dimension_numbers = #tpu.dot_dimension_numbers<[1], [0], [0], [1], [0, 0, 1, 1], [], []>} : vector<64x288xf32>, vector<288x32xf32>, vector<64x32xf32> -> vector<64x32xf32>
    %c0_30 = arith.constant 0 : index
    %c0_31 = arith.constant 0 : index
    %25 = vector.load %arg3[%c0_30, %c0_31] : memref<1x32xf32, #tpu.memory_space<vmem>>, vector<1x32xf32>
    %26 = vector.broadcast %25 : vector<1x32xf32> to vector<64x32xf32>
    %27 = arith.addf %24, %26 : vector<64x32xf32>
    %cst_32 = arith.constant 0.000000e+00 : f32
    %28 = vector.broadcast %cst_32 : f32 to vector<64x32xf32>
    %29 = arith.maximumf %27, %28 : vector<64x32xf32>
    %30 = vector.shape_cast %29 : vector<64x32xf32> to vector<8x8x32xf32>
    %31 = vector.extract_strided_slice %30 {offsets = [0, 0, 0], sizes = [7, 7, 32], strides = [1, 1, 1]} : vector<8x8x32xf32> to vector<7x7x32xf32>
    %c1_33 = arith.constant 1 : index
    %c1_34 = arith.constant 1 : index
    %c0_35 = arith.constant 0 : index
    %32 = vector.load %arg11[%c1_33, %c1_34, %c0_35] : memref<8x8x288xf32, #tpu.memory_space<vmem>>, vector<7x7x32xf32>
    tpu.vector_store %arg11[%c1_33, %c1_34, %c0_35], %31 {strides = array<i32>} : memref<8x8x288xf32, #tpu.memory_space<vmem>>, vector<7x7x32xf32>,
    %33 = vector.extract_strided_slice %30 {offsets = [0, 0, 0], sizes = [7, 8, 32], strides = [1, 1, 1]} : vector<8x8x32xf32> to vector<7x8x32xf32>
    %c1_36 = arith.constant 1 : index
    %c0_37 = arith.constant 0 : index
    %c32_38 = arith.constant 32 : index
    %34 = vector.load %arg11[%c1_36, %c0_37, %c32_38] : memref<8x8x288xf32, #tpu.memory_space<vmem>>, vector<7x8x32xf32>
    tpu.vector_store %arg11[%c1_36, %c0_37, %c32_38], %33 {strides = array<i32>} : memref<8x8x288xf32, #tpu.memory_space<vmem>>, vector<7x8x32xf32>,
    %35 = vector.extract_strided_slice %30 {offsets = [0, 1, 0], sizes = [7, 7, 32], strides = [1, 1, 1]} : vector<8x8x32xf32> to vector<7x7x32xf32>
    %c1_39 = arith.constant 1 : index
    %c0_40 = arith.constant 0 : index
    %c64_41 = arith.constant 64 : index
    %36 = vector.load %arg11[%c1_39, %c0_40, %c64_41] : memref<8x8x288xf32, #tpu.memory_space<vmem>>, vector<7x7x32xf32>
    tpu.vector_store %arg11[%c1_39, %c0_40, %c64_41], %35 {strides = array<i32>} : memref<8x8x288xf32, #tpu.memory_space<vmem>>, vector<7x7x32xf32>,
    %37 = vector.extract_strided_slice %30 {offsets = [0, 0, 0], sizes = [8, 7, 32], strides = [1, 1, 1]} : vector<8x8x32xf32> to vector<8x7x32xf32>
    %c0_42 = arith.constant 0 : index
    %c1_43 = arith.constant 1 : index
    %c96_44 = arith.constant 96 : index
    %38 = vector.load %arg11[%c0_42, %c1_43, %c96_44] : memref<8x8x288xf32, #tpu.memory_space<vmem>>, vector<8x7x32xf32>
    tpu.vector_store %arg11[%c0_42, %c1_43, %c96_44], %37 {strides = array<i32>} : memref<8x8x288xf32, #tpu.memory_space<vmem>>, vector<8x7x32xf32>,
    %c0_45 = arith.constant 0 : index
    %c0_46 = arith.constant 0 : index
    %c128_47 = arith.constant 128 : index
    %39 = vector.load %arg11[%c0_45, %c0_46, %c128_47] : memref<8x8x288xf32, #tpu.memory_space<vmem>>, vector<8x8x32xf32>
    tpu.vector_store %arg11[%c0_45, %c0_46, %c128_47], %30 {strides = array<i32>} : memref<8x8x288xf32, #tpu.memory_space<vmem>>, vector<8x8x32xf32>,
    %40 = vector.extract_strided_slice %30 {offsets = [0, 1, 0], sizes = [8, 7, 32], strides = [1, 1, 1]} : vector<8x8x32xf32> to vector<8x7x32xf32>
    %c0_48 = arith.constant 0 : index
    %c0_49 = arith.constant 0 : index
    %c160_50 = arith.constant 160 : index
    %41 = vector.load %arg11[%c0_48, %c0_49, %c160_50] : memref<8x8x288xf32, #tpu.memory_space<vmem>>, vector<8x7x32xf32>
    tpu.vector_store %arg11[%c0_48, %c0_49, %c160_50], %40 {strides = array<i32>} : memref<8x8x288xf32, #tpu.memory_space<vmem>>, vector<8x7x32xf32>,
    %42 = vector.extract_strided_slice %30 {offsets = [1, 0, 0], sizes = [7, 7, 32], strides = [1, 1, 1]} : vector<8x8x32xf32> to vector<7x7x32xf32>
    %c0_51 = arith.constant 0 : index
    %c1_52 = arith.constant 1 : index
    %c192_53 = arith.constant 192 : index
    %43 = vector.load %arg11[%c0_51, %c1_52, %c192_53] : memref<8x8x288xf32, #tpu.memory_space<vmem>>, vector<7x7x32xf32>
    tpu.vector_store %arg11[%c0_51, %c1_52, %c192_53], %42 {strides = array<i32>} : memref<8x8x288xf32, #tpu.memory_space<vmem>>, vector<7x7x32xf32>,
    %44 = vector.extract_strided_slice %30 {offsets = [1, 0, 0], sizes = [7, 8, 32], strides = [1, 1, 1]} : vector<8x8x32xf32> to vector<7x8x32xf32>
    %c0_54 = arith.constant 0 : index
    %c0_55 = arith.constant 0 : index
    %c224_56 = arith.constant 224 : index
    %45 = vector.load %arg11[%c0_54, %c0_55, %c224_56] : memref<8x8x288xf32, #tpu.memory_space<vmem>>, vector<7x8x32xf32>
    tpu.vector_store %arg11[%c0_54, %c0_55, %c224_56], %44 {strides = array<i32>} : memref<8x8x288xf32, #tpu.memory_space<vmem>>, vector<7x8x32xf32>,
    %46 = vector.extract_strided_slice %30 {offsets = [1, 1, 0], sizes = [7, 7, 32], strides = [1, 1, 1]} : vector<8x8x32xf32> to vector<7x7x32xf32>
    %c0_57 = arith.constant 0 : index
    %c0_58 = arith.constant 0 : index
    %c256_59 = arith.constant 256 : index
    %47 = vector.load %arg11[%c0_57, %c0_58, %c256_59] : memref<8x8x288xf32, #tpu.memory_space<vmem>>, vector<7x7x32xf32>
    tpu.vector_store %arg11[%c0_57, %c0_58, %c256_59], %46 {strides = array<i32>} : memref<8x8x288xf32, #tpu.memory_space<vmem>>, vector<7x7x32xf32>,
    %c0_60 = arith.constant 0 : index
    %c0_61 = arith.constant 0 : index
    %c0_62 = arith.constant 0 : index
    %48 = vector.load %arg11[%c0_60, %c0_61, %c0_62] : memref<8x8x288xf32, #tpu.memory_space<vmem>>, vector<8x8x288xf32>
    %49 = vector.shape_cast %48 : vector<8x8x288xf32> to vector<64x288xf32>
    %c0_63 = arith.constant 0 : index
    %c0_64 = arith.constant 0 : index
    %50 = vector.load %arg4[%c0_63, %c0_64] : memref<288x32xf32, #tpu.memory_space<vmem>>, vector<288x32xf32>
    %cst_65 = arith.constant dense<0.000000e+00> : vector<64x32xf32>
    %51 = tpu.matmul %49, %50, %cst_65 {dimension_numbers = #tpu.dot_dimension_numbers<[1], [0], [0], [1], [0, 0, 1, 1], [], []>} : vector<64x288xf32>, vector<288x32xf32>, vector<64x32xf32> -> vector<64x32xf32>
    %c0_66 = arith.constant 0 : index
    %c0_67 = arith.constant 0 : index
    %52 = vector.load %arg5[%c0_66, %c0_67] : memref<1x32xf32, #tpu.memory_space<vmem>>, vector<1x32xf32>
    %53 = vector.broadcast %52 : vector<1x32xf32> to vector<64x32xf32>
    %54 = arith.addf %51, %53 : vector<64x32xf32>
    %cst_68 = arith.constant 0.000000e+00 : f32
    %55 = vector.broadcast %cst_68 : f32 to vector<64x32xf32>
    %56 = arith.maximumf %54, %55 : vector<64x32xf32>
    %57 = vector.shape_cast %56 : vector<64x32xf32> to vector<8x8x32xf32>
    %58 = vector.extract_strided_slice %57 {offsets = [0, 0, 0], sizes = [7, 7, 32], strides = [1, 1, 1]} : vector<8x8x32xf32> to vector<7x7x32xf32>
    %c1_69 = arith.constant 1 : index
    %c1_70 = arith.constant 1 : index
    %c0_71 = arith.constant 0 : index
    %59 = vector.load %arg11[%c1_69, %c1_70, %c0_71] : memref<8x8x288xf32, #tpu.memory_space<vmem>>, vector<7x7x32xf32>
    tpu.vector_store %arg11[%c1_69, %c1_70, %c0_71], %58 {strides = array<i32>} : memref<8x8x288xf32, #tpu.memory_space<vmem>>, vector<7x7x32xf32>,
    %60 = vector.extract_strided_slice %57 {offsets = [0, 0, 0], sizes = [7, 8, 32], strides = [1, 1, 1]} : vector<8x8x32xf32> to vector<7x8x32xf32>
    %c1_72 = arith.constant 1 : index
    %c0_73 = arith.constant 0 : index
    %c32_74 = arith.constant 32 : index
    %61 = vector.load %arg11[%c1_72, %c0_73, %c32_74] : memref<8x8x288xf32, #tpu.memory_space<vmem>>, vector<7x8x32xf32>
    tpu.vector_store %arg11[%c1_72, %c0_73, %c32_74], %60 {strides = array<i32>} : memref<8x8x288xf32, #tpu.memory_space<vmem>>, vector<7x8x32xf32>,
    %62 = vector.extract_strided_slice %57 {offsets = [0, 1, 0], sizes = [7, 7, 32], strides = [1, 1, 1]} : vector<8x8x32xf32> to vector<7x7x32xf32>
    %c1_75 = arith.constant 1 : index
    %c0_76 = arith.constant 0 : index
    %c64_77 = arith.constant 64 : index
    %63 = vector.load %arg11[%c1_75, %c0_76, %c64_77] : memref<8x8x288xf32, #tpu.memory_space<vmem>>, vector<7x7x32xf32>
    tpu.vector_store %arg11[%c1_75, %c0_76, %c64_77], %62 {strides = array<i32>} : memref<8x8x288xf32, #tpu.memory_space<vmem>>, vector<7x7x32xf32>,
    %64 = vector.extract_strided_slice %57 {offsets = [0, 0, 0], sizes = [8, 7, 32], strides = [1, 1, 1]} : vector<8x8x32xf32> to vector<8x7x32xf32>
    %c0_78 = arith.constant 0 : index
    %c1_79 = arith.constant 1 : index
    %c96_80 = arith.constant 96 : index
    %65 = vector.load %arg11[%c0_78, %c1_79, %c96_80] : memref<8x8x288xf32, #tpu.memory_space<vmem>>, vector<8x7x32xf32>
    tpu.vector_store %arg11[%c0_78, %c1_79, %c96_80], %64 {strides = array<i32>} : memref<8x8x288xf32, #tpu.memory_space<vmem>>, vector<8x7x32xf32>,
    %c0_81 = arith.constant 0 : index
    %c0_82 = arith.constant 0 : index
    %c128_83 = arith.constant 128 : index
    %66 = vector.load %arg11[%c0_81, %c0_82, %c128_83] : memref<8x8x288xf32, #tpu.memory_space<vmem>>, vector<8x8x32xf32>
    tpu.vector_store %arg11[%c0_81, %c0_82, %c128_83], %57 {strides = array<i32>} : memref<8x8x288xf32, #tpu.memory_space<vmem>>, vector<8x8x32xf32>,
    %67 = vector.extract_strided_slice %57 {offsets = [0, 1, 0], sizes = [8, 7, 32], strides = [1, 1, 1]} : vector<8x8x32xf32> to vector<8x7x32xf32>
    %c0_84 = arith.constant 0 : index
    %c0_85 = arith.constant 0 : index
    %c160_86 = arith.constant 160 : index
    %68 = vector.load %arg11[%c0_84, %c0_85, %c160_86] : memref<8x8x288xf32, #tpu.memory_space<vmem>>, vector<8x7x32xf32>
    tpu.vector_store %arg11[%c0_84, %c0_85, %c160_86], %67 {strides = array<i32>} : memref<8x8x288xf32, #tpu.memory_space<vmem>>, vector<8x7x32xf32>,
    %69 = vector.extract_strided_slice %57 {offsets = [1, 0, 0], sizes = [7, 7, 32], strides = [1, 1, 1]} : vector<8x8x32xf32> to vector<7x7x32xf32>
    %c0_87 = arith.constant 0 : index
    %c1_88 = arith.constant 1 : index
    %c192_89 = arith.constant 192 : index
    %70 = vector.load %arg11[%c0_87, %c1_88, %c192_89] : memref<8x8x288xf32, #tpu.memory_space<vmem>>, vector<7x7x32xf32>
    tpu.vector_store %arg11[%c0_87, %c1_88, %c192_89], %69 {strides = array<i32>} : memref<8x8x288xf32, #tpu.memory_space<vmem>>, vector<7x7x32xf32>,
    %71 = vector.extract_strided_slice %57 {offsets = [1, 0, 0], sizes = [7, 8, 32], strides = [1, 1, 1]} : vector<8x8x32xf32> to vector<7x8x32xf32>
    %c0_90 = arith.constant 0 : index
    %c0_91 = arith.constant 0 : index
    %c224_92 = arith.constant 224 : index
    %72 = vector.load %arg11[%c0_90, %c0_91, %c224_92] : memref<8x8x288xf32, #tpu.memory_space<vmem>>, vector<7x8x32xf32>
    tpu.vector_store %arg11[%c0_90, %c0_91, %c224_92], %71 {strides = array<i32>} : memref<8x8x288xf32, #tpu.memory_space<vmem>>, vector<7x8x32xf32>,
    %73 = vector.extract_strided_slice %57 {offsets = [1, 1, 0], sizes = [7, 7, 32], strides = [1, 1, 1]} : vector<8x8x32xf32> to vector<7x7x32xf32>
    %c0_93 = arith.constant 0 : index
    %c0_94 = arith.constant 0 : index
    %c256_95 = arith.constant 256 : index
    %74 = vector.load %arg11[%c0_93, %c0_94, %c256_95] : memref<8x8x288xf32, #tpu.memory_space<vmem>>, vector<7x7x32xf32>
    tpu.vector_store %arg11[%c0_93, %c0_94, %c256_95], %73 {strides = array<i32>} : memref<8x8x288xf32, #tpu.memory_space<vmem>>, vector<7x7x32xf32>,
    %c0_96 = arith.constant 0 : index
    %c0_97 = arith.constant 0 : index
    %c0_98 = arith.constant 0 : index
    %75 = vector.load %arg11[%c0_96, %c0_97, %c0_98] : memref<8x8x288xf32, #tpu.memory_space<vmem>>, vector<8x8x288xf32>
    %76 = vector.shape_cast %75 : vector<8x8x288xf32> to vector<64x288xf32>
    %c0_99 = arith.constant 0 : index
    %c0_100 = arith.constant 0 : index
    %77 = vector.load %arg6[%c0_99, %c0_100] : memref<288x32xf32, #tpu.memory_space<vmem>>, vector<288x32xf32>
    %cst_101 = arith.constant dense<0.000000e+00> : vector<64x32xf32>
    %78 = tpu.matmul %76, %77, %cst_101 {dimension_numbers = #tpu.dot_dimension_numbers<[1], [0], [0], [1], [0, 0, 1, 1], [], []>} : vector<64x288xf32>, vector<288x32xf32>, vector<64x32xf32> -> vector<64x32xf32>
    %c0_102 = arith.constant 0 : index
    %c0_103 = arith.constant 0 : index
    %79 = vector.load %arg7[%c0_102, %c0_103] : memref<1x32xf32, #tpu.memory_space<vmem>>, vector<1x32xf32>
    %80 = vector.broadcast %79 : vector<1x32xf32> to vector<64x32xf32>
    %81 = arith.addf %78, %80 : vector<64x32xf32>
    %cst_104 = arith.constant 0.000000e+00 : f32
    %82 = vector.broadcast %cst_104 : f32 to vector<64x32xf32>
    %83 = arith.maximumf %81, %82 : vector<64x32xf32>
    %c0_105 = arith.constant 0 : index
    %c0_106 = arith.constant 0 : index
    %84 = vector.load %arg8[%c0_105, %c0_106] : memref<32x1xf32, #tpu.memory_space<vmem>>, vector<32x1xf32>
    %cst_107 = arith.constant dense<0.000000e+00> : vector<64x1xf32>
    %85 = tpu.matmul %83, %84, %cst_107 {dimension_numbers = #tpu.dot_dimension_numbers<[1], [0], [0], [1], [0, 0, 1, 1], [], []>} : vector<64x32xf32>, vector<32x1xf32>, vector<64x1xf32> -> vector<64x1xf32>
    %c0_108 = arith.constant 0 : index
    %c0_109 = arith.constant 0 : index
    %86 = vector.load %arg9[%c0_108, %c0_109] : memref<1x1xf32, #tpu.memory_space<vmem>>, vector<1x1xf32>
    %87 = vector.broadcast %86 : vector<1x1xf32> to vector<64x1xf32>
    %88 = arith.addf %85, %87 : vector<64x1xf32>
    %cst_110 = arith.constant 0.000000e+00 : f32
    %89 = vector.broadcast %cst_110 : f32 to vector<64x1xf32>
    %90 = arith.subf %89, %88 : vector<64x1xf32>
    %91 = math.exp %90 : vector<64x1xf32>
    %cst_111 = arith.constant 1.000000e+00 : f32
    %92 = vector.broadcast %cst_111 : f32 to vector<64x1xf32>
    %93 = arith.addf %92, %91 : vector<64x1xf32>
    %cst_112 = arith.constant 1.000000e+00 : f32
    %94 = vector.broadcast %cst_112 : f32 to vector<64x1xf32>
    %95 = arith.divf %94, %93 : vector<64x1xf32>
    %c0_113 = arith.constant 0 : index
    %c0_114 = arith.constant 0 : index
    %96 = vector.load %arg10[%c0_113, %c0_114] : memref<64x1xf32, #tpu.memory_space<vmem>>, vector<64x1xf32>
    tpu.vector_store %arg10[%c0_113, %c0_114], %95 {strides = array<i32>} : memref<64x1xf32, #tpu.memory_space<vmem>>, vector<64x1xf32>,
    return
  }
  func.func @transform_0(%arg0: i32) -> (i32, i32, i32, i32) {
    %c0_i32 = arith.constant 0 : i32
    %c0_i32_0 = arith.constant 0 : i32
    %c0_i32_1 = arith.constant 0 : i32
    %c0_i32_2 = arith.constant 0 : i32
    return %arg0, %c0_i32, %c0_i32_0, %c0_i32_1 : i32, i32, i32, i32
  }
  func.func @transform_1(%arg0: i32) -> (i32, i32) {
    %c0_i32 = arith.constant 0 : i32
    %c0_i32_0 = arith.constant 0 : i32
    %c0_i32_1 = arith.constant 0 : i32
    return %c0_i32, %c0_i32_0 : i32, i32
  }
  func.func @transform_2(%arg0: i32) -> (i32, i32) {
    %c0_i32 = arith.constant 0 : i32
    %c0_i32_0 = arith.constant 0 : i32
    %c0_i32_1 = arith.constant 0 : i32
    return %c0_i32, %c0_i32_0 : i32, i32
  }
  func.func @transform_3(%arg0: i32) -> (i32, i32) {
    %c0_i32 = arith.constant 0 : i32
    %c0_i32_0 = arith.constant 0 : i32
    %c0_i32_1 = arith.constant 0 : i32
    return %c0_i32, %c0_i32_0 : i32, i32
  }
  func.func @transform_4(%arg0: i32) -> (i32, i32) {
    %c0_i32 = arith.constant 0 : i32
    %c0_i32_0 = arith.constant 0 : i32
    %c0_i32_1 = arith.constant 0 : i32
    return %c0_i32, %c0_i32_0 : i32, i32
  }
  func.func @transform_5(%arg0: i32) -> (i32, i32) {
    %c0_i32 = arith.constant 0 : i32
    %c0_i32_0 = arith.constant 0 : i32
    %c0_i32_1 = arith.constant 0 : i32
    return %c0_i32, %c0_i32_0 : i32, i32
  }
  func.func @transform_6(%arg0: i32) -> (i32, i32) {
    %c0_i32 = arith.constant 0 : i32
    %c0_i32_0 = arith.constant 0 : i32
    %c0_i32_1 = arith.constant 0 : i32
    return %c0_i32, %c0_i32_0 : i32, i32
  }
  func.func @transform_7(%arg0: i32) -> (i32, i32) {
    %c0_i32 = arith.constant 0 : i32
    %c0_i32_0 = arith.constant 0 : i32
    %c0_i32_1 = arith.constant 0 : i32
    return %c0_i32, %c0_i32_0 : i32, i32
  }
  func.func @transform_8(%arg0: i32) -> (i32, i32) {
    %c0_i32 = arith.constant 0 : i32
    %c0_i32_0 = arith.constant 0 : i32
    %c0_i32_1 = arith.constant 0 : i32
    return %c0_i32, %c0_i32_0 : i32, i32
  }
  func.func @transform_9(%arg0: i32) -> (i32, i32) {
    %c0_i32 = arith.constant 0 : i32
    %c0_i32_0 = arith.constant 0 : i32
    return %arg0, %c0_i32 : i32, i32
  }
}

</mosaic_0001>

<llo_original>
// kernel: tpu_custom_call.1
$region0: #{tpu_custom_call.1}
  #allocation0 [shape = 'u32[]', space=smem, size = 0x4, offset = 0x4, fixed_abs, tag = 'smem constant byte address 0x4 - core index']
  #allocation1 [shape = 'u32[144,128]{1,0:T(1,128)}', space=vmem, size = 0x12000, scoped, tag = 'internal scratch']
  #allocation2 [shape = 'f32[8,8,288]{2,1,0:T(8,128)}', space=vmem, size = 0x18000, scoped, tag = 'scratch operand']
  #allocation3 [shape = 'f32[1,1]{1,0:T(1,128)S(1)}', space=vmem, size = 0x200, scoped, tag = 'scoped memory for tpu_custom_call.1']
  %s0 = inlined_call_operand.vmem [shape: f32[2,8,8,32], index: 0, kind: input, shape index: {}]
  %s1 = inlined_call_operand.vmem [shape: f32[288,32], index: 1, kind: input, shape index: {}]
  %s2 = inlined_call_operand.vmem [shape: f32[1,32], index: 2, kind: input, shape index: {}]
  %s3 = inlined_call_operand.vmem [shape: f32[288,32], index: 3, kind: input, shape index: {}]
  %s4 = inlined_call_operand.vmem [shape: f32[1,32], index: 4, kind: input, shape index: {}]
  %s5 = inlined_call_operand.vmem [shape: f32[288,32], index: 5, kind: input, shape index: {}]
  %s6 = inlined_call_operand.vmem [shape: f32[1,32], index: 6, kind: input, shape index: {}]
  %s7 = inlined_call_operand.vmem [shape: f32[32,1], index: 7, kind: input, shape index: {}]
  %s8 = inlined_call_operand.<no memory space> [shape: f32[1,1], index: 8, kind: input, shape index: {}]
  %s9 = inlined_call_operand.vmem [shape: f32[128,1], index: 9, kind: output, shape index: {}]
  %s10 = sld [smem:[#allocation0]]
  $region69: #{tpu_custom_call.1} parent=0
    _
  %s12 = ssub.s32 1, %s10
  %s13 = scalar_select 0, %s12, %s10
  %v14 = vstv %s8
  %15 = vst [vmem:[#allocation3] sm:$0x1] %v14
  loop: start=0, step=1, limit=4
  $region2: #{tpu_custom_call.1} parent=0 // loop_pre_header
    _
  $region3: #{tpu_custom_call.1} parent=0 // loop_header
    %s17 = sphi 0, %s21
    %p18 = scmp.ge.s32.totalorder %s17, 4
    %s27 = sphi 0, %s29
    %s30 = sphi 0, %s27
    %s31 = sphi 0, %s30
    %s47 = sphi 0, %s31
    %s51 = sphi 0, %s51
    %s53 = sphi 0, %s51
    %s54 = sphi 0, %s53
    %s68 = sphi 0, %s54
    %s72 = sphi 0, %s72
    %s74 = sphi 0, %s72
    %s75 = sphi 0, %s74
    %s89 = sphi 0, %s75
    %s93 = sphi 0, %s93
    %s95 = sphi 0, %s93
    %s96 = sphi 0, %s95
    %s110 = sphi 0, %s96
    %s114 = sphi 0, %s114
    %s116 = sphi 0, %s114
    %s117 = sphi 0, %s116
    %s131 = sphi 0, %s117
    %s135 = sphi 0, %s135
    %s137 = sphi 0, %s135
    %s138 = sphi 0, %s137
    %s152 = sphi 0, %s138
    %s156 = sphi 0, %s156
    %s158 = sphi 0, %s156
    %s159 = sphi 0, %s158
    %s173 = sphi 0, %s159
    %s177 = sphi 0, %s177
    %s179 = sphi 0, %s177
    %s180 = sphi 0, %s179
    %s194 = sphi 0, %s180
    %s198 = sphi 0, %s198
    %s200 = sphi 0, %s198
    %s201 = sphi 0, %s200
    %s215 = sphi 0, %s201
    %s221 = sphi 0, %s223
    %s224 = sphi 0, %s221
    %s225 = sphi 0, %s224
    %s241 = sphi 0, %s225
  $region4: #{tpu_custom_call.1} parent=0 // loop_header_branch
    %20 = sbr.rel (%p18) target = $region8
  $region5: #{tpu_custom_call.1} parent=0 // loop_body
    %s22 = ssub.s32 %s17, 1
    %s23 = ssub.s32 %s17, 2
    %s24 = sadd.s32 %s17, 1
    %s25 = ssub.s32 %s17, %s24
    %p26 = scmp.eq.s32.totalorder %s25, 0
    %s28 = sadd.s32 %s27, 1
    %s29 = scalar_select %p26, %s27, %s28
    %p32 = pneg %p26
    %p33 = scmp.eq.s32.totalorder %s17, 1
    %p34 = por %p32, %p33
    %p35 = scmp.ne.s32.totalorder %s27, %s30
    %p36 = scmp.eq.s32.totalorder %s17, 0
    %p37 = por %p35, %p36
    %p38 = scmp.ne.s32.totalorder %s27, %s30
    %p39 = scmp.eq.s32.totalorder %s22, 1
    %p40 = por %p38, %p39
    %p41 = scmp.ne.s32.totalorder %s30, %s31
    %p42 = scmp.eq.s32.totalorder %s22, 0
    %p43 = por %p41, %p42
    %p44 = scmp.ne.s32.totalorder %s30, %s31
    %p45 = scmp.eq.s32.totalorder %s23, 1
    %p46 = por %p44, %p45
    %p48 = scmp.ne.s32.totalorder %s31, %s47
    %p49 = scmp.eq.s32.totalorder %s23, 0
    %p50 = por %p48, %p49
    %s52 = sadd.s32 %s51, 1
    %p55 = scmp.eq.s32.totalorder %s17, 1
    %p56 = scmp.ne.s32.totalorder %s51, %s53
    %p57 = scmp.eq.s32.totalorder %s17, 0
    %p58 = por %p56, %p57
    %p59 = scmp.ne.s32.totalorder %s51, %s53
    %p60 = scmp.eq.s32.totalorder %s22, 1
    %p61 = por %p59, %p60
    %p62 = scmp.ne.s32.totalorder %s53, %s54
    %p63 = scmp.eq.s32.totalorder %s22, 0
    %p64 = por %p62, %p63
    %p65 = scmp.ne.s32.totalorder %s53, %s54
    %p66 = scmp.eq.s32.totalorder %s23, 1
    %p67 = por %p65, %p66
    %p69 = scmp.ne.s32.totalorder %s54, %s68
    %p70 = scmp.eq.s32.totalorder %s23, 0
    %p71 = por %p69, %p70
    %s73 = sadd.s32 %s72, 1
    %p76 = scmp.eq.s32.totalorder %s17, 1
    %p77 = scmp.ne.s32.totalorder %s72, %s74
    %p78 = scmp.eq.s32.totalorder %s17, 0
    %p79 = por %p77, %p78
    %p80 = scmp.ne.s32.totalorder %s72, %s74
    %p81 = scmp.eq.s32.totalorder %s22, 1
    %p82 = por %p80, %p81
    %p83 = scmp.ne.s32.totalorder %s74, %s75
    %p84 = scmp.eq.s32.totalorder %s22, 0
    %p85 = por %p83, %p84
    %p86 = scmp.ne.s32.totalorder %s74, %s75
    %p87 = scmp.eq.s32.totalorder %s23, 1
    %p88 = por %p86, %p87
    %p90 = scmp.ne.s32.totalorder %s75, %s89
    %p91 = scmp.eq.s32.totalorder %s23, 0
    %p92 = por %p90, %p91
    %s94 = sadd.s32 %s93, 1
    %p97 = scmp.eq.s32.totalorder %s17, 1
    %p98 = scmp.ne.s32.totalorder %s93, %s95
    %p99 = scmp.eq.s32.totalorder %s17, 0
    %p100 = por %p98, %p99
    %p101 = scmp.ne.s32.totalorder %s93, %s95
    %p102 = scmp.eq.s32.totalorder %s22, 1
    %p103 = por %p101, %p102
    %p104 = scmp.ne.s32.totalorder %s95, %s96
    %p105 = scmp.eq.s32.totalorder %s22, 0
    %p106 = por %p104, %p105
    %p107 = scmp.ne.s32.totalorder %s95, %s96
    %p108 = scmp.eq.s32.totalorder %s23, 1
    %p109 = por %p107, %p108
    %p111 = scmp.ne.s32.totalorder %s96, %s110
    %p112 = scmp.eq.s32.totalorder %s23, 0
    %p113 = por %p111, %p112
    %s115 = sadd.s32 %s114, 1
    %p118 = scmp.eq.s32.totalorder %s17, 1
    %p119 = scmp.ne.s32.totalorder %s114, %s116
    %p120 = scmp.eq.s32.totalorder %s17, 0
    %p121 = por %p119, %p120
    %p122 = scmp.ne.s32.totalorder %s114, %s116
    %p123 = scmp.eq.s32.totalorder %s22, 1
    %p124 = por %p122, %p123
    %p125 = scmp.ne.s32.totalorder %s116, %s117
    %p126 = scmp.eq.s32.totalorder %s22, 0
    %p127 = por %p125, %p126
    %p128 = scmp.ne.s32.totalorder %s116, %s117
    %p129 = scmp.eq.s32.totalorder %s23, 1
    %p130 = por %p128, %p129
    %p132 = scmp.ne.s32.totalorder %s117, %s131
    %p133 = scmp.eq.s32.totalorder %s23, 0
    %p134 = por %p132, %p133
    %s136 = sadd.s32 %s135, 1
    %p139 = scmp.eq.s32.totalorder %s17, 1
    %p140 = scmp.ne.s32.totalorder %s135, %s137
    %p141 = scmp.eq.s32.totalorder %s17, 0
    %p142 = por %p140, %p141
    %p143 = scmp.ne.s32.totalorder %s135, %s137
    %p144 = scmp.eq.s32.totalorder %s22, 1
    %p145 = por %p143, %p144
    %p146 = scmp.ne.s32.totalorder %s137, %s138
    %p147 = scmp.eq.s32.totalorder %s22, 0
    %p148 = por %p146, %p147
    %p149 = scmp.ne.s32.totalorder %s137, %s138
    %p150 = scmp.eq.s32.totalorder %s23, 1
    %p151 = por %p149, %p150
    %p153 = scmp.ne.s32.totalorder %s138, %s152
    %p154 = scmp.eq.s32.totalorder %s23, 0
    %p155 = por %p153, %p154
    %s157 = sadd.s32 %s156, 1
    %p160 = scmp.eq.s32.totalorder %s17, 1
    %p161 = scmp.ne.s32.totalorder %s156, %s158
    %p162 = scmp.eq.s32.totalorder %s17, 0
    %p163 = por %p161, %p162
    %p164 = scmp.ne.s32.totalorder %s156, %s158
    %p165 = scmp.eq.s32.totalorder %s22, 1
    %p166 = por %p164, %p165
    %p167 = scmp.ne.s32.totalorder %s158, %s159
    %p168 = scmp.eq.s32.totalorder %s22, 0
    %p169 = por %p167, %p168
    %p170 = scmp.ne.s32.totalorder %s158, %s159
    %p171 = scmp.eq.s32.totalorder %s23, 1
    %p172 = por %p170, %p171
    %p174 = scmp.ne.s32.totalorder %s159, %s173
    %p175 = scmp.eq.s32.totalorder %s23, 0
    %p176 = por %p174, %p175
    %s178 = sadd.s32 %s177, 1
    %p181 = scmp.eq.s32.totalorder %s17, 1
    %p182 = scmp.ne.s32.totalorder %s177, %s179
    %p183 = scmp.eq.s32.totalorder %s17, 0
    %p184 = por %p182, %p183
    %p185 = scmp.ne.s32.totalorder %s177, %s179
    %p186 = scmp.eq.s32.totalorder %s22, 1
    %p187 = por %p185, %p186
    %p188 = scmp.ne.s32.totalorder %s179, %s180
    %p189 = scmp.eq.s32.totalorder %s22, 0
    %p190 = por %p188, %p189
    %p191 = scmp.ne.s32.totalorder %s179, %s180
    %p192 = scmp.eq.s32.totalorder %s23, 1
    %p193 = por %p191, %p192
    %p195 = scmp.ne.s32.totalorder %s180, %s194
    %p196 = scmp.eq.s32.totalorder %s23, 0
    %p197 = por %p195, %p196
    %s199 = sadd.s32 %s198, 1
    %p202 = scmp.eq.s32.totalorder %s17, 1
    %p203 = scmp.ne.s32.totalorder %s198, %s200
    %p204 = scmp.eq.s32.totalorder %s17, 0
    %p205 = por %p203, %p204
    %p206 = scmp.ne.s32.totalorder %s198, %s200
    %p207 = scmp.eq.s32.totalorder %s22, 1
    %p208 = por %p206, %p207
    %p209 = scmp.ne.s32.totalorder %s200, %s201
    %p210 = scmp.eq.s32.totalorder %s22, 0
    %p211 = por %p209, %p210
    %p212 = scmp.ne.s32.totalorder %s200, %s201
    %p213 = scmp.eq.s32.totalorder %s23, 1
    %p214 = por %p212, %p213
    %p216 = scmp.ne.s32.totalorder %s201, %s215
    %p217 = scmp.eq.s32.totalorder %s23, 0
    %p218 = por %p216, %p217
    %s219 = ssub.s32 %s17, %s24
    %p220 = scmp.eq.s32.totalorder %s219, 0
    %s222 = sadd.s32 %s221, 1
    %s223 = scalar_select %p220, %s221, %s222
    %p226 = pneg %p220
    %p227 = scmp.eq.s32.totalorder %s17, 1
    %p228 = por %p226, %p227
    %p229 = scmp.ne.s32.totalorder %s221, %s224
    %p230 = scmp.eq.s32.totalorder %s17, 0
    %p231 = por %p229, %p230
    %p232 = scmp.ne.s32.totalorder %s221, %s224
    %p233 = scmp.eq.s32.totalorder %s22, 1
    %p234 = por %p232, %p233
    %p235 = scmp.ne.s32.totalorder %s224, %s225
    %p236 = scmp.eq.s32.totalorder %s22, 0
    %p237 = por %p235, %p236
    %p238 = scmp.ne.s32.totalorder %s224, %s225
    %p239 = scmp.eq.s32.totalorder %s23, 1
    %p240 = por %p238, %p239
    %p242 = scmp.ne.s32.totalorder %s225, %s241
    %p243 = scmp.eq.s32.totalorder %s23, 0
    %p244 = por %p242, %p243
    %p245 = scmp.le.s32.totalorder 1, %s17
    %p246 = scmp.lt.s32.totalorder %s17, 3
    %p247 = pnand %p245, %p246
    %p248 = pneg %p247
    // Predicated region
    $region9: #{tpu_custom_call.1} parent=5 // pred_check
      _
    $region10: #{tpu_custom_call.1} parent=5 // pred_check_branch
      %250 = sbr.rel (%p247) target = $region12
    $region11: #{tpu_custom_call.1} parent=5 // pred_region
      %s251 = ssub.s32 %s17, 1
      // Predicated region
      $region13: #{tpu_custom_call.1} parent=11 // pred_check
        %p252 = pneg %p64
      $region14: #{tpu_custom_call.1} parent=11 // pred_check_branch
        %254 = sbr.rel (%p252) target = $region16
      $region15: #{tpu_custom_call.1} parent=11 // pred_region
        _
      $region16: #{tpu_custom_call.1} parent=11 // pred_fallthru
        _
      // Predicated region
      $region17: #{tpu_custom_call.1} parent=11 // pred_check
        %p255 = pneg %p85
      $region18: #{tpu_custom_call.1} parent=11 // pred_check_branch
        %257 = sbr.rel (%p255) target = $region20
      $region19: #{tpu_custom_call.1} parent=11 // pred_region
        _
      $region20: #{tpu_custom_call.1} parent=11 // pred_fallthru
        _
      // Predicated region
      $region21: #{tpu_custom_call.1} parent=11 // pred_check
        %p258 = pneg %p106
      $region22: #{tpu_custom_call.1} parent=11 // pred_check_branch
        %260 = sbr.rel (%p258) target = $region24
      $region23: #{tpu_custom_call.1} parent=11 // pred_region
        _
      $region24: #{tpu_custom_call.1} parent=11 // pred_fallthru
        _
      // Predicated region
      $region25: #{tpu_custom_call.1} parent=11 // pred_check
        %p261 = pneg %p127
      $region26: #{tpu_custom_call.1} parent=11 // pred_check_branch
        %263 = sbr.rel (%p261) target = $region28
      $region27: #{tpu_custom_call.1} parent=11 // pred_region
        _
      $region28: #{tpu_custom_call.1} parent=11 // pred_fallthru
        _
      // Predicated region
      $region29: #{tpu_custom_call.1} parent=11 // pred_check
        %p264 = pneg %p148
      $region30: #{tpu_custom_call.1} parent=11 // pred_check_branch
        %266 = sbr.rel (%p264) target = $region32
      $region31: #{tpu_custom_call.1} parent=11 // pred_region
        _
      $region32: #{tpu_custom_call.1} parent=11 // pred_fallthru
        _
      // Predicated region
      $region33: #{tpu_custom_call.1} parent=11 // pred_check
        %p267 = pneg %p169
      $region34: #{tpu_custom_call.1} parent=11 // pred_check_branch
        %269 = sbr.rel (%p267) target = $region36
      $region35: #{tpu_custom_call.1} parent=11 // pred_region
        _
      $region36: #{tpu_custom_call.1} parent=11 // pred_fallthru
        _
      // Predicated region
      $region37: #{tpu_custom_call.1} parent=11 // pred_check
        %p270 = pneg %p190
      $region38: #{tpu_custom_call.1} parent=11 // pred_check_branch
        %272 = sbr.rel (%p270) target = $region40
      $region39: #{tpu_custom_call.1} parent=11 // pred_region
        _
      $region40: #{tpu_custom_call.1} parent=11 // pred_fallthru
        _
      // Predicated region
      $region41: #{tpu_custom_call.1} parent=11 // pred_check
        %p273 = pneg %p211
      $region42: #{tpu_custom_call.1} parent=11 // pred_check_branch
        %275 = sbr.rel (%p273) target = $region44
      $region43: #{tpu_custom_call.1} parent=11 // pred_region
        _
      $region44: #{tpu_custom_call.1} parent=11 // pred_fallthru
        _
    $region12: #{tpu_custom_call.1} parent=5 // pred_fallthru
      _
    %p276 = scmp.lt.s32.totalorder %s17, 2
    // Predicated region
    $region45: #{tpu_custom_call.1} parent=5 // pred_check
      %p277 = pneg %p276
    $region46: #{tpu_custom_call.1} parent=5 // pred_check_branch
      %279 = sbr.rel (%p277) target = $region48
    $region47: #{tpu_custom_call.1} parent=5 // pred_region
      // Predicated region
      $region49: #{tpu_custom_call.1} parent=47 // pred_check
        %p280 = pneg %p37
      $region50: #{tpu_custom_call.1} parent=47 // pred_check_branch
        %282 = sbr.rel (%p280) target = $region52
      $region51: #{tpu_custom_call.1} parent=47 // pred_region
        %p283 = scmp.lt.s32.totalorder %s17, 1
        %s284 = scalar_select %p283, %s17, 1
        %s285 = smul.addr %s284, 8
        %s286 = smul.addr %s285, 8
        %s287 = scalar_lea.vmem %s0, %s286
      $region52: #{tpu_custom_call.1} parent=47 // pred_fallthru
        _
    $region48: #{tpu_custom_call.1} parent=5 // pred_fallthru
      _
    %p288 = scmp.le.s32.totalorder 1, %s17
    %p289 = scmp.lt.s32.totalorder %s17, 3
    %p290 = pnand %p288, %p289
    %p291 = pneg %p290
    // Predicated region
    $region53: #{tpu_custom_call.1} parent=5 // pred_check
      _
    $region54: #{tpu_custom_call.1} parent=5 // pred_check_branch
      %293 = sbr.rel (%p290) target = $region56
    $region55: #{tpu_custom_call.1} parent=5 // pred_region
      %s294 = ssub.s32 %s17, 1
      %p295 = scmp.lt.s32.totalorder %s22, 1
      %s296 = scalar_select %p295, %s22, 1
      %s297 = smul.addr %s296, 8
      %s298 = smul.addr %s297, 8
      %s299 = scalar_lea.vmem %s0, %s298
      %p300 = pneg %p43
      %p301 = pneg %p40
      %p302 = pneg %p64
      %p303 = pneg %p61
      %p304 = pneg %p85
      %p305 = pneg %p82
      %p306 = pneg %p106
      %p307 = pneg %p103
      %p308 = pneg %p127
      %p309 = pneg %p124
      %p310 = pneg %p148
      %p311 = pneg %p145
      %p312 = pneg %p169
      %p313 = pneg %p166
      %p314 = pneg %p190
      %p315 = pneg %p187
      %p316 = pneg %p211
      %p317 = pneg %p208
      %p318 = pneg %p237
      %p319 = pneg %p234
      %s320 = smul.u32 8, %s22
      %p321 = scmp.lt.s32.totalorder %s320, 15
      %s322 = scalar_select %p321, %s320, 15
      %s323 = smul.addr %s322, 8
      %s324 = scalar_lea.vmem %s9, %s323
      %p325 = scmp.lt.s32.totalorder %s22, 1
      %s326 = scalar_select %p325, %s22, 1
      %s327 = smul.addr %s326, 8
      %s328 = smul.addr %s327, 8
      %s329 = scalar_lea.vmem %s0, %s328
      %s330 = smul.u32 8, %s22
      %p331 = scmp.lt.s32.totalorder %s330, 15
      %s332 = scalar_select %p331, %s330, 15
      %s333 = smul.addr %s332, 8
      %s334 = scalar_lea.vmem %s9, %s333
      %s335 = smul.u32 8, %s22
      %336 = vst [vmem:[#allocation2] sm:$0xff] 0.0
      %337 = vst [vmem:[#allocation2 + $0x8] sm:$0xff] 0.0
      %vm338 = vcmask 261120
      %339 = vst.msk [vmem:[#allocation2 + $0x10] sm:$0xff] %vm338, 0.0
      %340 = vst [vmem:[#allocation2 + $0x18] sm:$0xff] 0.0
      %341 = vst [vmem:[#allocation2 + $0x20] sm:$0xff] 0.0
      %342 = vst.msk [vmem:[#allocation2 + $0x28] sm:$0xff] %vm338, 0.0
      %343 = vst [vmem:[#allocation2 + $0x30] sm:$0xff] 0.0
      %344 = vst [vmem:[#allocation2 + $0x38] sm:$0xff] 0.0
      %345 = vst.msk [vmem:[#allocation2 + $0x40] sm:$0xff] %vm338, 0.0
      %346 = vst [vmem:[#allocation2 + $0x48] sm:$0xff] 0.0
      %347 = vst [vmem:[#allocation2 + $0x50] sm:$0xff] 0.0
      %348 = vst.msk [vmem:[#allocation2 + $0x58] sm:$0xff] %vm338, 0.0
      %349 = vst [vmem:[#allocation2 + $0x60] sm:$0xff] 0.0
      %350 = vst [vmem:[#allocation2 + $0x68] sm:$0xff] 0.0
      %351 = vst.msk [vmem:[#allocation2 + $0x70] sm:$0xff] %vm338, 0.0
      %352 = vst [vmem:[#allocation2 + $0x78] sm:$0xff] 0.0
      %353 = vst [vmem:[#allocation2 + $0x80] sm:$0xff] 0.0
      %354 = vst.msk [vmem:[#allocation2 + $0x88] sm:$0xff] %vm338, 0.0
      %355 = vst [vmem:[#allocation2 + $0x90] sm:$0xff] 0.0
      %356 = vst [vmem:[#allocation2 + $0x98] sm:$0xff] 0.0
      %357 = vst.msk [vmem:[#allocation2 + $0xa0] sm:$0xff] %vm338, 0.0
      %358 = vst [vmem:[#allocation2 + $0xa8] sm:$0xff] 0.0
      %359 = vst [vmem:[#allocation2 + $0xb0] sm:$0xff] 0.0
      %360 = vst.msk [vmem:[#allocation2 + $0xb8] sm:$0xff] %vm338, 0.0
      %v361 = vld [vmem:[%s329] sm:$0xff]
      %v362 = vld [vmem:[%s329 + $0x8] sm:$0xff]
      %v363 = vld [vmem:[%s329 + $0x10] sm:$0xff]
      %v364 = vld [vmem:[%s329 + $0x18] sm:$0xff]
      %v365 = vld [vmem:[%s329 + $0x20] sm:$0xff]
      %v366 = vld [vmem:[%s329 + $0x28] sm:$0xff]
      %v367 = vld [vmem:[%s329 + $0x30] sm:$0xff]
      %v368 = vld [vmem:[%s329 + $0x38] sm:$0xff]
      %v376 = vrot.slane %v361, 7
      %v377 = vrot.slane %v362, 7
      %v378 = vrot.slane %v363, 7
      %v379 = vrot.slane %v364, 7
      %v380 = vrot.slane %v365, 7
      %v381 = vrot.slane %v366, 7
      %v382 = vrot.slane %v367, 7
      %s390 = scalar_lea.vmem [#allocation2], 24
      %vm391 = vcmask 261121
      %392 = vst.msk [vmem:[%s390] sm:$0xfe] %vm391, %v376
      %393 = vst.msk [vmem:[%s390 + $0x18] sm:$0xfe] %vm391, %v377
      %394 = vst.msk [vmem:[%s390 + $0x30] sm:$0xfe] %vm391, %v378
      %395 = vst.msk [vmem:[%s390 + $0x48] sm:$0xfe] %vm391, %v379
      %396 = vst.msk [vmem:[%s390 + $0x60] sm:$0xfe] %vm391, %v380
      %397 = vst.msk [vmem:[%s390 + $0x78] sm:$0xfe] %vm391, %v381
      %398 = vst.msk [vmem:[%s390 + $0x90] sm:$0xfe] %vm391, %v382
      %399 = vrot.lane.b32.xlu0 %v361, 32
      %v400 = vpop.permute.xlu0 %399
      %401 = vrot.lane.b32.xlu0 %v362, 32
      %v402 = vpop.permute.xlu0 %401
      %403 = vrot.lane.b32.xlu0 %v363, 32
      %v404 = vpop.permute.xlu0 %403
      %405 = vrot.lane.b32.xlu0 %v364, 32
      %v406 = vpop.permute.xlu0 %405
      %407 = vrot.lane.b32.xlu0 %v365, 32
      %v408 = vpop.permute.xlu0 %407
      %409 = vrot.lane.b32.xlu0 %v366, 32
      %v410 = vpop.permute.xlu0 %409
      %411 = vrot.lane.b32.xlu0 %v367, 32
      %v412 = vpop.permute.xlu0 %411
      %vm420 = vcmask 523520
      %421 = vst.msk [vmem:[%s390] sm:$0xff] %vm420, %v400
      %422 = vst.msk [vmem:[%s390 + $0x18] sm:$0xff] %vm420, %v402
      %423 = vst.msk [vmem:[%s390 + $0x30] sm:$0xff] %vm420, %v404
      %424 = vst.msk [vmem:[%s390 + $0x48] sm:$0xff] %vm420, %v406
      %425 = vst.msk [vmem:[%s390 + $0x60] sm:$0xff] %vm420, %v408
      %426 = vst.msk [vmem:[%s390 + $0x78] sm:$0xff] %vm420, %v410
      %427 = vst.msk [vmem:[%s390 + $0x90] sm:$0xff] %vm420, %v412
      %v428 = vrot.slane %v361, 1
      %v429 = vrot.slane %v362, 1
      %v430 = vrot.slane %v363, 1
      %v431 = vrot.slane %v364, 1
      %v432 = vrot.slane %v365, 1
      %v433 = vrot.slane %v366, 1
      %v434 = vrot.slane %v367, 1
      %435 = vrot.lane.b32.xlu0 %v428, 64
      %v436 = vpop.permute.xlu0 %435
      %437 = vrot.lane.b32.xlu0 %v429, 64
      %v438 = vpop.permute.xlu0 %437
      %439 = vrot.lane.b32.xlu0 %v430, 64
      %v440 = vpop.permute.xlu0 %439
      %441 = vrot.lane.b32.xlu0 %v431, 64
      %v442 = vpop.permute.xlu0 %441
      %443 = vrot.lane.b32.xlu0 %v432, 64
      %v444 = vpop.permute.xlu0 %443
      %445 = vrot.lane.b32.xlu0 %v433, 64
      %v446 = vpop.permute.xlu0 %445
      %447 = vrot.lane.b32.xlu0 %v434, 64
      %v448 = vpop.permute.xlu0 %447
      %vm456 = vcmask 784896
      %457 = vst.msk [vmem:[%s390] sm:$0x7f] %vm456, %v436
      %458 = vst.msk [vmem:[%s390 + $0x18] sm:$0x7f] %vm456, %v438
      %459 = vst.msk [vmem:[%s390 + $0x30] sm:$0x7f] %vm456, %v440
      %460 = vst.msk [vmem:[%s390 + $0x48] sm:$0x7f] %vm456, %v442
      %461 = vst.msk [vmem:[%s390 + $0x60] sm:$0x7f] %vm456, %v444
      %462 = vst.msk [vmem:[%s390 + $0x78] sm:$0x7f] %vm456, %v446
      %463 = vst.msk [vmem:[%s390 + $0x90] sm:$0x7f] %vm456, %v448
      %v465 = vrot.slane %v368, 7
      %466 = vrot.lane.b32.xlu0 %v376, 96
      %v467 = vpop.permute.xlu0 %466
      %468 = vrot.lane.b32.xlu0 %v377, 96
      %v469 = vpop.permute.xlu0 %468
      %470 = vrot.lane.b32.xlu0 %v378, 96
      %v471 = vpop.permute.xlu0 %470
      %472 = vrot.lane.b32.xlu0 %v379, 96
      %v473 = vpop.permute.xlu0 %472
      %474 = vrot.lane.b32.xlu0 %v380, 96
      %v475 = vpop.permute.xlu0 %474
      %476 = vrot.lane.b32.xlu0 %v381, 96
      %v477 = vpop.permute.xlu0 %476
      %478 = vrot.lane.b32.xlu0 %v382, 96
      %v479 = vpop.permute.xlu0 %478
      %480 = vrot.lane.b32.xlu0 %v465, 96
      %v481 = vpop.permute.xlu0 %480
      %vm490 = vcmask 1048321
      %491 = vst.msk [vmem:[#allocation2] sm:$0xfe] %vm490, %v467
      %492 = vst.msk [vmem:[#allocation2 + $0x18] sm:$0xfe] %vm490, %v469
      %493 = vst.msk [vmem:[#allocation2 + $0x30] sm:$0xfe] %vm490, %v471
      %494 = vst.msk [vmem:[#allocation2 + $0x48] sm:$0xfe] %vm490, %v473
      %495 = vst.msk [vmem:[#allocation2 + $0x60] sm:$0xfe] %vm490, %v475
      %496 = vst.msk [vmem:[#allocation2 + $0x78] sm:$0xfe] %vm490, %v477
      %497 = vst.msk [vmem:[#allocation2 + $0x90] sm:$0xfe] %vm490, %v479
      %498 = vst.msk [vmem:[#allocation2 + $0xa8] sm:$0xfe] %vm490, %v481
      %499 = vst.msk [vmem:[#allocation2 + $0x8] sm:$0xff] %vm338, %v361
      %500 = vst.msk [vmem:[#allocation2 + $0x20] sm:$0xff] %vm338, %v362
      %501 = vst.msk [vmem:[#allocation2 + $0x38] sm:$0xff] %vm338, %v363
      %502 = vst.msk [vmem:[#allocation2 + $0x50] sm:$0xff] %vm338, %v364
      %503 = vst.msk [vmem:[#allocation2 + $0x68] sm:$0xff] %vm338, %v365
      %504 = vst.msk [vmem:[#allocation2 + $0x80] sm:$0xff] %vm338, %v366
      %505 = vst.msk [vmem:[#allocation2 + $0x98] sm:$0xff] %vm338, %v367
      %506 = vst.msk [vmem:[#allocation2 + $0xb0] sm:$0xff] %vm338, %v368
      %v507 = vrot.slane %v368, 1
      %508 = vrot.lane.b32.xlu0 %v428, 32
      %v509 = vpop.permute.xlu0 %508
      %510 = vrot.lane.b32.xlu0 %v429, 32
      %v511 = vpop.permute.xlu0 %510
      %512 = vrot.lane.b32.xlu0 %v430, 32
      %v513 = vpop.permute.xlu0 %512
      %514 = vrot.lane.b32.xlu0 %v431, 32
      %v515 = vpop.permute.xlu0 %514
      %516 = vrot.lane.b32.xlu0 %v432, 32
      %v517 = vpop.permute.xlu0 %516
      %518 = vrot.lane.b32.xlu0 %v433, 32
      %v519 = vpop.permute.xlu0 %518
      %520 = vrot.lane.b32.xlu0 %v434, 32
      %v521 = vpop.permute.xlu0 %520
      %522 = vrot.lane.b32.xlu0 %v507, 32
      %v523 = vpop.permute.xlu0 %522
      %vm532 = vcmask 522496
      %533 = vst.msk [vmem:[#allocation2 + $0x8] sm:$0x7f] %vm532, %v509
      %534 = vst.msk [vmem:[#allocation2 + $0x20] sm:$0x7f] %vm532, %v511
      %535 = vst.msk [vmem:[#allocation2 + $0x38] sm:$0x7f] %vm532, %v513
      %536 = vst.msk [vmem:[#allocation2 + $0x50] sm:$0x7f] %vm532, %v515
      %537 = vst.msk [vmem:[#allocation2 + $0x68] sm:$0x7f] %vm532, %v517
      %538 = vst.msk [vmem:[#allocation2 + $0x80] sm:$0x7f] %vm532, %v519
      %539 = vst.msk [vmem:[#allocation2 + $0x98] sm:$0x7f] %vm532, %v521
      %540 = vst.msk [vmem:[#allocation2 + $0xb0] sm:$0x7f] %vm532, %v523
      %541 = vrot.lane.b32.xlu0 %v377, 64
      %v542 = vpop.permute.xlu0 %541
      %543 = vrot.lane.b32.xlu0 %v378, 64
      %v544 = vpop.permute.xlu0 %543
      %545 = vrot.lane.b32.xlu0 %v379, 64
      %v546 = vpop.permute.xlu0 %545
      %547 = vrot.lane.b32.xlu0 %v380, 64
      %v548 = vpop.permute.xlu0 %547
      %549 = vrot.lane.b32.xlu0 %v381, 64
      %v550 = vpop.permute.xlu0 %549
      %551 = vrot.lane.b32.xlu0 %v382, 64
      %v552 = vpop.permute.xlu0 %551
      %553 = vrot.lane.b32.xlu0 %v465, 64
      %v554 = vpop.permute.xlu0 %553
      %vm562 = vcmask 785921
      %563 = vst.msk [vmem:[#allocation2 + $0x8] sm:$0xfe] %vm562, %v542
      %564 = vst.msk [vmem:[#allocation2 + $0x20] sm:$0xfe] %vm562, %v544
      %565 = vst.msk [vmem:[#allocation2 + $0x38] sm:$0xfe] %vm562, %v546
      %566 = vst.msk [vmem:[#allocation2 + $0x50] sm:$0xfe] %vm562, %v548
      %567 = vst.msk [vmem:[#allocation2 + $0x68] sm:$0xfe] %vm562, %v550
      %568 = vst.msk [vmem:[#allocation2 + $0x80] sm:$0xfe] %vm562, %v552
      %569 = vst.msk [vmem:[#allocation2 + $0x98] sm:$0xfe] %vm562, %v554
      %570 = vrot.lane.b32.xlu0 %v362, 96
      %v571 = vpop.permute.xlu0 %570
      %572 = vrot.lane.b32.xlu0 %v363, 96
      %v573 = vpop.permute.xlu0 %572
      %574 = vrot.lane.b32.xlu0 %v364, 96
      %v575 = vpop.permute.xlu0 %574
      %576 = vrot.lane.b32.xlu0 %v365, 96
      %v577 = vpop.permute.xlu0 %576
      %578 = vrot.lane.b32.xlu0 %v366, 96
      %v579 = vpop.permute.xlu0 %578
      %580 = vrot.lane.b32.xlu0 %v367, 96
      %v581 = vpop.permute.xlu0 %580
      %582 = vrot.lane.b32.xlu0 %v368, 96
      %v583 = vpop.permute.xlu0 %582
      %vm591 = vcmask 1048320
      %592 = vst.msk [vmem:[#allocation2 + $0x8] sm:$0xff] %vm591, %v571
      %593 = vst.msk [vmem:[#allocation2 + $0x20] sm:$0xff] %vm591, %v573
      %594 = vst.msk [vmem:[#allocation2 + $0x38] sm:$0xff] %vm591, %v575
      %595 = vst.msk [vmem:[#allocation2 + $0x50] sm:$0xff] %vm591, %v577
      %596 = vst.msk [vmem:[#allocation2 + $0x68] sm:$0xff] %vm591, %v579
      %597 = vst.msk [vmem:[#allocation2 + $0x80] sm:$0xff] %vm591, %v581
      %598 = vst.msk [vmem:[#allocation2 + $0x98] sm:$0xff] %vm591, %v583
      %vm606 = vcmask 260096
      %607 = vst.msk [vmem:[#allocation2 + $0x10] sm:$0x7f] %vm606, %v429
      %608 = vst.msk [vmem:[#allocation2 + $0x28] sm:$0x7f] %vm606, %v430
      %609 = vst.msk [vmem:[#allocation2 + $0x40] sm:$0x7f] %vm606, %v431
      %610 = vst.msk [vmem:[#allocation2 + $0x58] sm:$0x7f] %vm606, %v432
      %611 = vst.msk [vmem:[#allocation2 + $0x70] sm:$0x7f] %vm606, %v433
      %612 = vst.msk [vmem:[#allocation2 + $0x88] sm:$0x7f] %vm606, %v434
      %613 = vst.msk [vmem:[#allocation2 + $0xa0] sm:$0x7f] %vm606, %v507
      %v614 = vld [vmem:[#allocation2] sm:$0xff]
      %v615 = vld [vmem:[#allocation2 + $0x8] sm:$0xff]
      %v616 = vld [vmem:[#allocation2 + $0x10] sm:$0xff]
      %v617 = vld [vmem:[#allocation2 + $0x18] sm:$0xff]
      %v618 = vld [vmem:[#allocation2 + $0x20] sm:$0xff]
      %v619 = vld [vmem:[#allocation2 + $0x28] sm:$0xff]
      %v620 = vld [vmem:[#allocation2 + $0x30] sm:$0xff]
      %v621 = vld [vmem:[#allocation2 + $0x38] sm:$0xff]
      %v622 = vld [vmem:[#allocation2 + $0x40] sm:$0xff]
      %v623 = vld [vmem:[#allocation2 + $0x48] sm:$0xff]
      %v624 = vld [vmem:[#allocation2 + $0x50] sm:$0xff]
      %v625 = vld [vmem:[#allocation2 + $0x58] sm:$0xff]
      %v626 = vld [vmem:[#allocation2 + $0x60] sm:$0xff]
      %v627 = vld [vmem:[#allocation2 + $0x68] sm:$0xff]
      %v628 = vld [vmem:[#allocation2 + $0x70] sm:$0xff]
      %v629 = vld [vmem:[#allocation2 + $0x78] sm:$0xff]
      %v630 = vld [vmem:[#allocation2 + $0x80] sm:$0xff]
      %v631 = vld [vmem:[#allocation2 + $0x88] sm:$0xff]
      %v632 = vld [vmem:[#allocation2 + $0x90] sm:$0xff]
      %v633 = vld [vmem:[#allocation2 + $0x98] sm:$0xff]
      %v634 = vld [vmem:[#allocation2 + $0xa0] sm:$0xff]
      %v635 = vld [vmem:[#allocation2 + $0xa8] sm:$0xff]
      %v636 = vld [vmem:[#allocation2 + $0xb0] sm:$0xff]
      %v637 = vld [vmem:[#allocation2 + $0xb8] sm:$0xff]
      %v638 = vld [vmem:[%s1] sm:$0xff]
      %v639 = vld [vmem:[%s1 + $0x8] sm:$0xff]
      %v640 = vld [vmem:[%s1 + $0x10] sm:$0xff]
      %v641 = vld [vmem:[%s1 + $0x18] sm:$0xff]
      %v642 = vld [vmem:[%s1 + $0x20] sm:$0xff]
      %v643 = vld [vmem:[%s1 + $0x28] sm:$0xff]
      %v644 = vld [vmem:[%s1 + $0x30] sm:$0xff]
      %v645 = vld [vmem:[%s1 + $0x38] sm:$0xff]
      %v646 = vld [vmem:[%s1 + $0x40] sm:$0xff]
      %v647 = vld [vmem:[%s1 + $0x48] sm:$0xff]
      %v648 = vld [vmem:[%s1 + $0x50] sm:$0xff]
      %v649 = vld [vmem:[%s1 + $0x58] sm:$0xff]
      %v650 = vld [vmem:[%s1 + $0x60] sm:$0xff]
      %v651 = vld [vmem:[%s1 + $0x68] sm:$0xff]
      %v652 = vld [vmem:[%s1 + $0x70] sm:$0xff]
      %v653 = vld [vmem:[%s1 + $0x78] sm:$0xff]
      %v654 = vld [vmem:[%s1 + $0x80] sm:$0xff]
      %v655 = vld [vmem:[%s1 + $0x88] sm:$0xff]
      %v656 = vld [vmem:[%s1 + $0x90] sm:$0xff]
      %v657 = vld [vmem:[%s1 + $0x98] sm:$0xff]
      %v658 = vld [vmem:[%s1 + $0xa0] sm:$0xff]
      %v659 = vld [vmem:[%s1 + $0xa8] sm:$0xff]
      %v660 = vld [vmem:[%s1 + $0xb0] sm:$0xff]
      %v661 = vld [vmem:[%s1 + $0xb8] sm:$0xff]
      %v662 = vld [vmem:[%s1 + $0xc0] sm:$0xff]
      %v663 = vld [vmem:[%s1 + $0xc8] sm:$0xff]
      %v664 = vld [vmem:[%s1 + $0xd0] sm:$0xff]
      %v665 = vld [vmem:[%s1 + $0xd8] sm:$0xff]
      %v666 = vld [vmem:[%s1 + $0xe0] sm:$0xff]
      %v667 = vld [vmem:[%s1 + $0xe8] sm:$0xff]
      %v668 = vld [vmem:[%s1 + $0xf0] sm:$0xff]
      %v669 = vld [vmem:[%s1 + $0xf8] sm:$0xff]
      %v670 = vld [vmem:[%s1 + $0x100] sm:$0xff]
      %v671 = vld [vmem:[%s1 + $0x108] sm:$0xff]
      %v672 = vld [vmem:[%s1 + $0x110] sm:$0xff]
      %v673 = vld [vmem:[%s1 + $0x118] sm:$0xff]
      %v674 = vld [vmem:[%s2] sm:$0x1]
      %v676 = vlaneseq
      %v677 = vshrl.u32 %v676, 7
      %v678 = vsub.s32 0, %v677
      %v679 = vrot.slane %v674, %v678
      %v682 = vsel %vm338, %v616, 0
      %v685 = vsel %vm338, %v619, 0
      %v688 = vsel %vm338, %v622, 0
      %v691 = vsel %vm338, %v625, 0
      %v694 = vsel %vm338, %v628, 0
      %v697 = vsel %vm338, %v631, 0
      %v700 = vsel %vm338, %v634, 0
      %v703 = vsel %vm338, %v637, 0
      %705 = vmatprep.subr.mxu0 0.0
      %706 = vmatpush1.msra.mxu0 %v638
      %707 = vmatprep.subr.mxu0 0.0
      %708 = vmatpush1.msra.mxu0 %v639
      %709 = vmatprep.subr.mxu0 0.0
      %710 = vmatpush1.msra.mxu0 %v640
      %711 = vmatprep.subr.mxu0 0.0
      %712 = vmatpush1.msra.mxu0 %v641
      %713 = vmatprep.subr.mxu0 0.0
      %714 = vmatpush1.msra.mxu0 %v642
      %715 = vmatprep.subr.mxu0 0.0
      %716 = vmatpush1.msra.mxu0 %v643
      %717 = vmatprep.subr.mxu0 0.0
      %718 = vmatpush1.msra.mxu0 %v644
      %719 = vmatprep.subr.mxu0 0.0
      %720 = vmatpush1.msra.mxu0 %v645
      %721 = vmatprep.subr.mxu0 0.0
      %722 = vmatpush1.msra.mxu0 %v646
      %723 = vmatprep.subr.mxu0 0.0
      %724 = vmatpush1.msra.mxu0 %v647
      %725 = vmatprep.subr.mxu0 0.0
      %726 = vmatpush1.msra.mxu0 %v648
      %727 = vmatprep.subr.mxu0 0.0
      %728 = vmatpush1.msra.mxu0 %v649
      %729 = vmatprep.subr.mxu0 0.0
      %730 = vmatpush1.msra.mxu0 %v650
      %731 = vmatprep.subr.mxu0 0.0
      %732 = vmatpush1.msra.mxu0 %v651
      %733 = vmatprep.subr.mxu0 0.0
      %734 = vmatpush1.msra.mxu0 %v652
      %735 = vmatprep.subr.mxu0 0.0
      %736 = vmatpush1.msra.mxu0 %v653
      %737 = vmatprep.subr.mxu0 0.0
      %738 = vmatpush1.msra.mxu0 %v654
      %739 = vmatprep.subr.mxu0 0.0
      %740 = vmatpush1.msra.mxu0 %v655
      %741 = vmatprep.subr.mxu0 0.0
      %742 = vmatpush1.msra.mxu0 %v656
      %743 = vmatprep.subr.mxu0 0.0
      %744 = vmatpush1.msra.mxu0 %v657
      %745 = vmatprep.subr.mxu0 0.0
      %746 = vmatpush1.msra.mxu0 %v658
      %747 = vmatprep.subr.mxu0 0.0
      %748 = vmatpush1.msra.mxu0 %v659
      %749 = vmatprep.subr.mxu0 0.0
      %750 = vmatpush1.msra.mxu0 %v660
      %751 = vmatprep.subr.mxu0 0.0
      %752 = vmatpush1.msra.mxu0 %v661
      %753 = vmatprep.subr.mxu0 0.0
      %754 = vmatpush1.msra.mxu0 %v662
      %755 = vmatprep.subr.mxu0 0.0
      %756 = vmatpush1.msra.mxu0 %v663
      %757 = vmatprep.subr.mxu0 0.0
      %758 = vmatpush1.msra.mxu0 %v664
      %759 = vmatprep.subr.mxu0 0.0
      %760 = vmatpush1.msra.mxu0 %v665
      %761 = vmatprep.subr.mxu0 0.0
      %762 = vmatpush1.msra.mxu0 %v666
      %763 = vmatprep.subr.mxu0 0.0
      %764 = vmatpush1.msra.mxu0 %v667
      %765 = vmatprep.subr.mxu0 0.0
      %766 = vmatpush1.msra.mxu0 %v668
      %767 = vmatprep.subr.mxu0 0.0
      %768 = vmatpush1.msra.mxu0 %v669
      %769 = vmatprep.mubr.f32.mxu0 %v615
      %770 = vmatmul.mubr.f32.gmra.mrb[0].mxu0 %v614
      %v771 = vpop.f32.mrb[0].mxu0
      %v772 = vadd.f32 %v679, %v771
      %v773 = vpop.f32.mrb[0].mxu0
      %774 = vmatprep.mubr.f32.mxu0 %v618
      %775 = vmatmul.mubr.f32.gmra.mrb[0].mxu0 %v617
      %v776 = vpop.f32.mrb[0].mxu0
      %v777 = vadd.f32 %v679, %v776
      %v778 = vpop.f32.mrb[0].mxu0
      %779 = vmatprep.mubr.f32.mxu0 %v621
      %780 = vmatmul.mubr.f32.gmra.mrb[0].mxu0 %v620
      %v781 = vpop.f32.mrb[0].mxu0
      %v782 = vadd.f32 %v679, %v781
      %v783 = vpop.f32.mrb[0].mxu0
      %784 = vmatprep.mubr.f32.mxu0 %v624
      %785 = vmatmul.mubr.f32.gmra.mrb[0].mxu0 %v623
      %v786 = vpop.f32.mrb[0].mxu0
      %v787 = vadd.f32 %v679, %v786
      %v788 = vpop.f32.mrb[0].mxu0
      %789 = vmatprep.mubr.f32.mxu0 %v627
      %790 = vmatmul.mubr.f32.gmra.mrb[0].mxu0 %v626
      %v791 = vpop.f32.mrb[0].mxu0
      %v792 = vadd.f32 %v679, %v791
      %v793 = vpop.f32.mrb[0].mxu0
      %794 = vmatprep.mubr.f32.mxu0 %v630
      %795 = vmatmul.mubr.f32.gmra.mrb[0].mxu0 %v629
      %v796 = vpop.f32.mrb[0].mxu0
      %v797 = vadd.f32 %v679, %v796
      %v798 = vpop.f32.mrb[0].mxu0
      %799 = vmatprep.mubr.f32.mxu0 %v633
      %800 = vmatmul.mubr.f32.gmra.mrb[0].mxu0 %v632
      %v801 = vpop.f32.mrb[0].mxu0
      %v802 = vadd.f32 %v679, %v801
      %v803 = vpop.f32.mrb[0].mxu0
      %804 = vmatprep.mubr.f32.mxu0 %v636
      %805 = vmatmul.mubr.f32.gmra.mrb[0].mxu0 %v635
      %v806 = vpop.f32.mrb[0].mxu0
      %v807 = vadd.f32 %v679, %v806
      %v808 = vpop.f32.mrb[0].mxu0
      %809 = vdwg.mxu0
      %810 = vmatprep.subr.mxu0 0.0
      %811 = vmatpush1.msra.mxu0 %v670
      %812 = vmatprep.subr.mxu0 0.0
      %813 = vmatpush1.msra.mxu0 %v671
      %814 = vmatprep.subr.mxu0 0.0
      %815 = vmatpush1.msra.mxu0 %v672
      %816 = vmatprep.subr.mxu0 0.0
      %817 = vmatpush1.msra.mxu0 %v673
      %818 = vmatprep.subr.mxu0 0.0
      %819 = vmatpush1.msra.mxu0 0.0
      %820 = vmatprep.subr.mxu0 0.0
      %821 = vmatpush1.msra.mxu0 0.0
      %822 = vmatprep.subr.mxu0 0.0
      %823 = vmatpush1.msra.mxu0 0.0
      %824 = vmatprep.subr.mxu0 0.0
      %825 = vmatpush1.msra.mxu0 0.0
      %826 = vmatprep.subr.mxu0 0.0
      %827 = vmatpush1.msra.mxu0 0.0
      %828 = vmatprep.subr.mxu0 0.0
      %829 = vmatpush1.msra.mxu0 0.0
      %830 = vmatprep.subr.mxu0 0.0
      %831 = vmatpush1.msra.mxu0 0.0
      %832 = vmatprep.subr.mxu0 0.0
      %833 = vmatpush1.msra.mxu0 0.0
      %834 = vmatprep.subr.mxu0 0.0
      %835 = vmatpush1.msra.mxu0 0.0
      %836 = vmatprep.subr.mxu0 0.0
      %837 = vmatpush1.msra.mxu0 0.0
      %838 = vmatprep.subr.mxu0 0.0
      %839 = vmatpush1.msra.mxu0 0.0
      %840 = vmatprep.subr.mxu0 0.0
      %841 = vmatpush1.msra.mxu0 0.0
      %842 = vmatprep.subr.mxu0 0.0
      %843 = vmatpush1.msra.mxu0 0.0
      %844 = vmatprep.subr.mxu0 0.0
      %845 = vmatpush1.msra.mxu0 0.0
      %846 = vmatprep.subr.mxu0 0.0
      %847 = vmatpush1.msra.mxu0 0.0
      %848 = vmatprep.subr.mxu0 0.0
      %849 = vmatpush1.msra.mxu0 0.0
      %850 = vmatprep.subr.mxu0 0.0
      %851 = vmatpush1.msra.mxu0 0.0
      %852 = vmatprep.subr.mxu0 0.0
      %853 = vmatpush1.msra.mxu0 0.0
      %854 = vmatprep.subr.mxu0 0.0
      %855 = vmatpush1.msra.mxu0 0.0
      %856 = vmatprep.subr.mxu0 0.0
      %857 = vmatpush1.msra.mxu0 0.0
      %858 = vmatprep.subr.mxu0 0.0
      %859 = vmatpush1.msra.mxu0 0.0
      %860 = vmatprep.subr.mxu0 0.0
      %861 = vmatpush1.msra.mxu0 0.0
      %862 = vmatprep.subr.mxu0 0.0
      %863 = vmatpush1.msra.mxu0 0.0
      %864 = vmatprep.subr.mxu0 0.0
      %865 = vmatpush1.msra.mxu0 0.0
      %866 = vmatprep.subr.mxu0 0.0
      %867 = vmatpush1.msra.mxu0 0.0
      %868 = vmatprep.subr.mxu0 0.0
      %869 = vmatpush1.msra.mxu0 0.0
      %870 = vmatprep.subr.mxu0 0.0
      %871 = vmatpush1.msra.mxu0 0.0
      %872 = vmatprep.subr.mxu0 0.0
      %873 = vmatpush1.msra.mxu0 0.0
      %874 = vmatprep.mubr.f32.mxu0 0.0
      %875 = vmatmul.mubr.f32.gmra.mrb[0].mxu0 %v682
      %v876 = vpop.f32.mrb[0].mxu0
      %v877 = vadd.f32 %v772, %v876
      %v878 = vpop.f32.mrb[0].mxu0
      %879 = vmatprep.mubr.f32.mxu0 0.0
      %880 = vmatmul.mubr.f32.gmra.mrb[0].mxu0 %v685
      %v881 = vpop.f32.mrb[0].mxu0
      %v882 = vadd.f32 %v777, %v881
      %v883 = vpop.f32.mrb[0].mxu0
      %884 = vmatprep.mubr.f32.mxu0 0.0
      %885 = vmatmul.mubr.f32.gmra.mrb[0].mxu0 %v688
      %v886 = vpop.f32.mrb[0].mxu0
      %v887 = vadd.f32 %v782, %v886
      %v888 = vpop.f32.mrb[0].mxu0
      %889 = vmatprep.mubr.f32.mxu0 0.0
      %890 = vmatmul.mubr.f32.gmra.mrb[0].mxu0 %v691
      %v891 = vpop.f32.mrb[0].mxu0
      %v892 = vadd.f32 %v787, %v891
      %v893 = vpop.f32.mrb[0].mxu0
      %894 = vmatprep.mubr.f32.mxu0 0.0
      %895 = vmatmul.mubr.f32.gmra.mrb[0].mxu0 %v694
      %v896 = vpop.f32.mrb[0].mxu0
      %v897 = vadd.f32 %v792, %v896
      %v898 = vpop.f32.mrb[0].mxu0
      %899 = vmatprep.mubr.f32.mxu0 0.0
      %900 = vmatmul.mubr.f32.gmra.mrb[0].mxu0 %v697
      %v901 = vpop.f32.mrb[0].mxu0
      %v902 = vadd.f32 %v797, %v901
      %v903 = vpop.f32.mrb[0].mxu0
      %904 = vmatprep.mubr.f32.mxu0 0.0
      %905 = vmatmul.mubr.f32.gmra.mrb[0].mxu0 %v700
      %v906 = vpop.f32.mrb[0].mxu0
      %v907 = vadd.f32 %v802, %v906
      %v908 = vpop.f32.mrb[0].mxu0
      %909 = vmatprep.mubr.f32.mxu0 0.0
      %910 = vmatmul.mubr.f32.gmra.mrb[0].mxu0 %v703
      %v911 = vpop.f32.mrb[0].mxu0
      %v912 = vadd.f32 %v807, %v911
      %v913 = vpop.f32.mrb[0].mxu0
      %914 = vdwg.mxu0
      %v915 = vmax.f32 %v877, 0.0
      %v916 = vmax.f32 %v882, 0.0
      %v917 = vmax.f32 %v887, 0.0
      %v918 = vmax.f32 %v892, 0.0
      %v919 = vmax.f32 %v897, 0.0
      %v920 = vmax.f32 %v902, 0.0
      %v921 = vmax.f32 %v907, 0.0
      %v922 = vmax.f32 %v912, 0.0
      %v930 = vrot.slane %v915, 7
      %v931 = vrot.slane %v916, 7
      %v932 = vrot.slane %v917, 7
      %v933 = vrot.slane %v918, 7
      %v934 = vrot.slane %v919, 7
      %v935 = vrot.slane %v920, 7
      %v936 = vrot.slane %v921, 7
      %944 = vst.msk [vmem:[%s390] sm:$0xfe] %vm391, %v930
      %945 = vst.msk [vmem:[%s390 + $0x18] sm:$0xfe] %vm391, %v931
      %946 = vst.msk [vmem:[%s390 + $0x30] sm:$0xfe] %vm391, %v932
      %947 = vst.msk [vmem:[%s390 + $0x48] sm:$0xfe] %vm391, %v933
      %948 = vst.msk [vmem:[%s390 + $0x60] sm:$0xfe] %vm391, %v934
      %949 = vst.msk [vmem:[%s390 + $0x78] sm:$0xfe] %vm391, %v935
      %950 = vst.msk [vmem:[%s390 + $0x90] sm:$0xfe] %vm391, %v936
      %951 = vrot.lane.b32.xlu0 %v915, 32
      %v952 = vpop.permute.xlu0 %951
      %953 = vrot.lane.b32.xlu0 %v916, 32
      %v954 = vpop.permute.xlu0 %953
      %955 = vrot.lane.b32.xlu0 %v917, 32
      %v956 = vpop.permute.xlu0 %955
      %957 = vrot.lane.b32.xlu0 %v918, 32
      %v958 = vpop.permute.xlu0 %957
      %959 = vrot.lane.b32.xlu0 %v919, 32
      %v960 = vpop.permute.xlu0 %959
      %961 = vrot.lane.b32.xlu0 %v920, 32
      %v962 = vpop.permute.xlu0 %961
      %963 = vrot.lane.b32.xlu0 %v921, 32
      %v964 = vpop.permute.xlu0 %963
      %972 = vst.msk [vmem:[%s390] sm:$0xff] %vm420, %v952
      %973 = vst.msk [vmem:[%s390 + $0x18] sm:$0xff] %vm420, %v954
      %974 = vst.msk [vmem:[%s390 + $0x30] sm:$0xff] %vm420, %v956
      %975 = vst.msk [vmem:[%s390 + $0x48] sm:$0xff] %vm420, %v958
      %976 = vst.msk [vmem:[%s390 + $0x60] sm:$0xff] %vm420, %v960
      %977 = vst.msk [vmem:[%s390 + $0x78] sm:$0xff] %vm420, %v962
      %978 = vst.msk [vmem:[%s390 + $0x90] sm:$0xff] %vm420, %v964
      %v979 = vrot.slane %v915, 1
      %v980 = vrot.slane %v916, 1
      %v981 = vrot.slane %v917, 1
      %v982 = vrot.slane %v918, 1
      %v983 = vrot.slane %v919, 1
      %v984 = vrot.slane %v920, 1
      %v985 = vrot.slane %v921, 1
      %986 = vrot.lane.b32.xlu0 %v979, 64
      %v987 = vpop.permute.xlu0 %986
      %988 = vrot.lane.b32.xlu0 %v980, 64
      %v989 = vpop.permute.xlu0 %988
      %990 = vrot.lane.b32.xlu0 %v981, 64
      %v991 = vpop.permute.xlu0 %990
      %992 = vrot.lane.b32.xlu0 %v982, 64
      %v993 = vpop.permute.xlu0 %992
      %994 = vrot.lane.b32.xlu0 %v983, 64
      %v995 = vpop.permute.xlu0 %994
      %996 = vrot.lane.b32.xlu0 %v984, 64
      %v997 = vpop.permute.xlu0 %996
      %998 = vrot.lane.b32.xlu0 %v985, 64
      %v999 = vpop.permute.xlu0 %998
      %1007 = vst.msk [vmem:[%s390] sm:$0x7f] %vm456, %v987
      %1008 = vst.msk [vmem:[%s390 + $0x18] sm:$0x7f] %vm456, %v989
      %1009 = vst.msk [vmem:[%s390 + $0x30] sm:$0x7f] %vm456, %v991
      %1010 = vst.msk [vmem:[%s390 + $0x48] sm:$0x7f] %vm456, %v993
      %1011 = vst.msk [vmem:[%s390 + $0x60] sm:$0x7f] %vm456, %v995
      %1012 = vst.msk [vmem:[%s390 + $0x78] sm:$0x7f] %vm456, %v997
      %1013 = vst.msk [vmem:[%s390 + $0x90] sm:$0x7f] %vm456, %v999
      %v1015 = vrot.slane %v922, 7
      %1016 = vrot.lane.b32.xlu0 %v930, 96
      %v1017 = vpop.permute.xlu0 %1016
      %1018 = vrot.lane.b32.xlu0 %v931, 96
      %v1019 = vpop.permute.xlu0 %1018
      %1020 = vrot.lane.b32.xlu0 %v932, 96
      %v1021 = vpop.permute.xlu0 %1020
      %1022 = vrot.lane.b32.xlu0 %v933, 96
      %v1023 = vpop.permute.xlu0 %1022
      %1024 = vrot.lane.b32.xlu0 %v934, 96
      %v1025 = vpop.permute.xlu0 %1024
      %1026 = vrot.lane.b32.xlu0 %v935, 96
      %v1027 = vpop.permute.xlu0 %1026
      %1028 = vrot.lane.b32.xlu0 %v936, 96
      %v1029 = vpop.permute.xlu0 %1028
      %1030 = vrot.lane.b32.xlu0 %v1015, 96
      %v1031 = vpop.permute.xlu0 %1030
      %1040 = vst.msk [vmem:[#allocation2] sm:$0xfe] %vm490, %v1017
      %1041 = vst.msk [vmem:[#allocation2 + $0x18] sm:$0xfe] %vm490, %v1019
      %1042 = vst.msk [vmem:[#allocation2 + $0x30] sm:$0xfe] %vm490, %v1021
      %1043 = vst.msk [vmem:[#allocation2 + $0x48] sm:$0xfe] %vm490, %v1023
      %1044 = vst.msk [vmem:[#allocation2 + $0x60] sm:$0xfe] %vm490, %v1025
      %1045 = vst.msk [vmem:[#allocation2 + $0x78] sm:$0xfe] %vm490, %v1027
      %1046 = vst.msk [vmem:[#allocation2 + $0x90] sm:$0xfe] %vm490, %v1029
      %1047 = vst.msk [vmem:[#allocation2 + $0xa8] sm:$0xfe] %vm490, %v1031
      %1048 = vst.msk [vmem:[#allocation2 + $0x8] sm:$0xff] %vm338, %v915
      %1049 = vst.msk [vmem:[#allocation2 + $0x20] sm:$0xff] %vm338, %v916
      %1050 = vst.msk [vmem:[#allocation2 + $0x38] sm:$0xff] %vm338, %v917
      %1051 = vst.msk [vmem:[#allocation2 + $0x50] sm:$0xff] %vm338, %v918
      %1052 = vst.msk [vmem:[#allocation2 + $0x68] sm:$0xff] %vm338, %v919
      %1053 = vst.msk [vmem:[#allocation2 + $0x80] sm:$0xff] %vm338, %v920
      %1054 = vst.msk [vmem:[#allocation2 + $0x98] sm:$0xff] %vm338, %v921
      %1055 = vst.msk [vmem:[#allocation2 + $0xb0] sm:$0xff] %vm338, %v922
      %v1056 = vrot.slane %v922, 1
      %1057 = vrot.lane.b32.xlu0 %v979, 32
      %v1058 = vpop.permute.xlu0 %1057
      %1059 = vrot.lane.b32.xlu0 %v980, 32
      %v1060 = vpop.permute.xlu0 %1059
      %1061 = vrot.lane.b32.xlu0 %v981, 32
      %v1062 = vpop.permute.xlu0 %1061
      %1063 = vrot.lane.b32.xlu0 %v982, 32
      %v1064 = vpop.permute.xlu0 %1063
      %1065 = vrot.lane.b32.xlu0 %v983, 32
      %v1066 = vpop.permute.xlu0 %1065
      %1067 = vrot.lane.b32.xlu0 %v984, 32
      %v1068 = vpop.permute.xlu0 %1067
      %1069 = vrot.lane.b32.xlu0 %v985, 32
      %v1070 = vpop.permute.xlu0 %1069
      %1071 = vrot.lane.b32.xlu0 %v1056, 32
      %v1072 = vpop.permute.xlu0 %1071
      %1081 = vst.msk [vmem:[#allocation2 + $0x8] sm:$0x7f] %vm532, %v1058
      %1082 = vst.msk [vmem:[#allocation2 + $0x20] sm:$0x7f] %vm532, %v1060
      %1083 = vst.msk [vmem:[#allocation2 + $0x38] sm:$0x7f] %vm532, %v1062
      %1084 = vst.msk [vmem:[#allocation2 + $0x50] sm:$0x7f] %vm532, %v1064
      %1085 = vst.msk [vmem:[#allocation2 + $0x68] sm:$0x7f] %vm532, %v1066
      %1086 = vst.msk [vmem:[#allocation2 + $0x80] sm:$0x7f] %vm532, %v1068
      %1087 = vst.msk [vmem:[#allocation2 + $0x98] sm:$0x7f] %vm532, %v1070
      %1088 = vst.msk [vmem:[#allocation2 + $0xb0] sm:$0x7f] %vm532, %v1072
      %1089 = vrot.lane.b32.xlu0 %v931, 64
      %v1090 = vpop.permute.xlu0 %1089
      %1091 = vrot.lane.b32.xlu0 %v932, 64
      %v1092 = vpop.permute.xlu0 %1091
      %1093 = vrot.lane.b32.xlu0 %v933, 64
      %v1094 = vpop.permute.xlu0 %1093
      %1095 = vrot.lane.b32.xlu0 %v934, 64
      %v1096 = vpop.permute.xlu0 %1095
      %1097 = vrot.lane.b32.xlu0 %v935, 64
      %v1098 = vpop.permute.xlu0 %1097
      %1099 = vrot.lane.b32.xlu0 %v936, 64
      %v1100 = vpop.permute.xlu0 %1099
      %1101 = vrot.lane.b32.xlu0 %v1015, 64
      %v1102 = vpop.permute.xlu0 %1101
      %1110 = vst.msk [vmem:[#allocation2 + $0x8] sm:$0xfe] %vm562, %v1090
      %1111 = vst.msk [vmem:[#allocation2 + $0x20] sm:$0xfe] %vm562, %v1092
      %1112 = vst.msk [vmem:[#allocation2 + $0x38] sm:$0xfe] %vm562, %v1094
      %1113 = vst.msk [vmem:[#allocation2 + $0x50] sm:$0xfe] %vm562, %v1096
      %1114 = vst.msk [vmem:[#allocation2 + $0x68] sm:$0xfe] %vm562, %v1098
      %1115 = vst.msk [vmem:[#allocation2 + $0x80] sm:$0xfe] %vm562, %v1100
      %1116 = vst.msk [vmem:[#allocation2 + $0x98] sm:$0xfe] %vm562, %v1102
      %1117 = vrot.lane.b32.xlu0 %v916, 96
      %v1118 = vpop.permute.xlu0 %1117
      %1119 = vrot.lane.b32.xlu0 %v917, 96
      %v1120 = vpop.permute.xlu0 %1119
      %1121 = vrot.lane.b32.xlu0 %v918, 96
      %v1122 = vpop.permute.xlu0 %1121
      %1123 = vrot.lane.b32.xlu0 %v919, 96
      %v1124 = vpop.permute.xlu0 %1123
      %1125 = vrot.lane.b32.xlu0 %v920, 96
      %v1126 = vpop.permute.xlu0 %1125
      %1127 = vrot.lane.b32.xlu0 %v921, 96
      %v1128 = vpop.permute.xlu0 %1127
      %1129 = vrot.lane.b32.xlu0 %v922, 96
      %v1130 = vpop.permute.xlu0 %1129
      %1138 = vst.msk [vmem:[#allocation2 + $0x8] sm:$0xff] %vm591, %v1118
      %1139 = vst.msk [vmem:[#allocation2 + $0x20] sm:$0xff] %vm591, %v1120
      %1140 = vst.msk [vmem:[#allocation2 + $0x38] sm:$0xff] %vm591, %v1122
      %1141 = vst.msk [vmem:[#allocation2 + $0x50] sm:$0xff] %vm591, %v1124
      %1142 = vst.msk [vmem:[#allocation2 + $0x68] sm:$0xff] %vm591, %v1126
      %1143 = vst.msk [vmem:[#allocation2 + $0x80] sm:$0xff] %vm591, %v1128
      %1144 = vst.msk [vmem:[#allocation2 + $0x98] sm:$0xff] %vm591, %v1130
      %1152 = vst.msk [vmem:[#allocation2 + $0x10] sm:$0x7f] %vm606, %v980
      %1153 = vst.msk [vmem:[#allocation2 + $0x28] sm:$0x7f] %vm606, %v981
      %1154 = vst.msk [vmem:[#allocation2 + $0x40] sm:$0x7f] %vm606, %v982
      %1155 = vst.msk [vmem:[#allocation2 + $0x58] sm:$0x7f] %vm606, %v983
      %1156 = vst.msk [vmem:[#allocation2 + $0x70] sm:$0x7f] %vm606, %v984
      %1157 = vst.msk [vmem:[#allocation2 + $0x88] sm:$0x7f] %vm606, %v985
      %1158 = vst.msk [vmem:[#allocation2 + $0xa0] sm:$0x7f] %vm606, %v1056
      %v1159 = vld [vmem:[#allocation2] sm:$0xff]
      %v1160 = vld [vmem:[#allocation2 + $0x8] sm:$0xff]
      %v1161 = vld [vmem:[#allocation2 + $0x10] sm:$0xff]
      %v1162 = vld [vmem:[#allocation2 + $0x18] sm:$0xff]
      %v1163 = vld [vmem:[#allocation2 + $0x20] sm:$0xff]
      %v1164 = vld [vmem:[#allocation2 + $0x28] sm:$0xff]
      %v1165 = vld [vmem:[#allocation2 + $0x30] sm:$0xff]
      %v1166 = vld [vmem:[#allocation2 + $0x38] sm:$0xff]
      %v1167 = vld [vmem:[#allocation2 + $0x40] sm:$0xff]
      %v1168 = vld [vmem:[#allocation2 + $0x48] sm:$0xff]
      %v1169 = vld [vmem:[#allocation2 + $0x50] sm:$0xff]
      %v1170 = vld [vmem:[#allocation2 + $0x58] sm:$0xff]
      %v1171 = vld [vmem:[#allocation2 + $0x60] sm:$0xff]
      %v1172 = vld [vmem:[#allocation2 + $0x68] sm:$0xff]
      %v1173 = vld [vmem:[#allocation2 + $0x70] sm:$0xff]
      %v1174 = vld [vmem:[#allocation2 + $0x78] sm:$0xff]
      %v1175 = vld [vmem:[#allocation2 + $0x80] sm:$0xff]
      %v1176 = vld [vmem:[#allocation2 + $0x88] sm:$0xff]
      %v1177 = vld [vmem:[#allocation2 + $0x90] sm:$0xff]
      %v1178 = vld [vmem:[#allocation2 + $0x98] sm:$0xff]
      %v1179 = vld [vmem:[#allocation2 + $0xa0] sm:$0xff]
      %v1180 = vld [vmem:[#allocation2 + $0xa8] sm:$0xff]
      %v1181 = vld [vmem:[#allocation2 + $0xb0] sm:$0xff]
      %v1182 = vld [vmem:[#allocation2 + $0xb8] sm:$0xff]
      %v1183 = vld [vmem:[%s3] sm:$0xff]
      %v1184 = vld [vmem:[%s3 + $0x8] sm:$0xff]
      %v1185 = vld [vmem:[%s3 + $0x10] sm:$0xff]
      %v1186 = vld [vmem:[%s3 + $0x18] sm:$0xff]
      %v1187 = vld [vmem:[%s3 + $0x20] sm:$0xff]
      %v1188 = vld [vmem:[%s3 + $0x28] sm:$0xff]
      %v1189 = vld [vmem:[%s3 + $0x30] sm:$0xff]
      %v1190 = vld [vmem:[%s3 + $0x38] sm:$0xff]
      %v1191 = vld [vmem:[%s3 + $0x40] sm:$0xff]
      %v1192 = vld [vmem:[%s3 + $0x48] sm:$0xff]
      %v1193 = vld [vmem:[%s3 + $0x50] sm:$0xff]
      %v1194 = vld [vmem:[%s3 + $0x58] sm:$0xff]
      %v1195 = vld [vmem:[%s3 + $0x60] sm:$0xff]
      %v1196 = vld [vmem:[%s3 + $0x68] sm:$0xff]
      %v1197 = vld [vmem:[%s3 + $0x70] sm:$0xff]
      %v1198 = vld [vmem:[%s3 + $0x78] sm:$0xff]
      %v1199 = vld [vmem:[%s3 + $0x80] sm:$0xff]
      %v1200 = vld [vmem:[%s3 + $0x88] sm:$0xff]
      %v1201 = vld [vmem:[%s3 + $0x90] sm:$0xff]
      %v1202 = vld [vmem:[%s3 + $0x98] sm:$0xff]
      %v1203 = vld [vmem:[%s3 + $0xa0] sm:$0xff]
      %v1204 = vld [vmem:[%s3 + $0xa8] sm:$0xff]
      %v1205 = vld [vmem:[%s3 + $0xb0] sm:$0xff]
      %v1206 = vld [vmem:[%s3 + $0xb8] sm:$0xff]
      %v1207 = vld [vmem:[%s3 + $0xc0] sm:$0xff]
      %v1208 = vld [vmem:[%s3 + $0xc8] sm:$0xff]
      %v1209 = vld [vmem:[%s3 + $0xd0] sm:$0xff]
      %v1210 = vld [vmem:[%s3 + $0xd8] sm:$0xff]
      %v1211 = vld [vmem:[%s3 + $0xe0] sm:$0xff]
      %v1212 = vld [vmem:[%s3 + $0xe8] sm:$0xff]
      %v1213 = vld [vmem:[%s3 + $0xf0] sm:$0xff]
      %v1214 = vld [vmem:[%s3 + $0xf8] sm:$0xff]
      %v1215 = vld [vmem:[%s3 + $0x100] sm:$0xff]
      %v1216 = vld [vmem:[%s3 + $0x108] sm:$0xff]
      %v1217 = vld [vmem:[%s3 + $0x110] sm:$0xff]
      %v1218 = vld [vmem:[%s3 + $0x118] sm:$0xff]
      %v1219 = vld [vmem:[%s4] sm:$0x1]
      %v1221 = vlaneseq
      %v1222 = vshrl.u32 %v1221, 7
      %v1223 = vsub.s32 0, %v1222
      %v1224 = vrot.slane %v1219, %v1223
      %v1227 = vsel %vm338, %v1161, 0
      %v1230 = vsel %vm338, %v1164, 0
      %v1233 = vsel %vm338, %v1167, 0
      %v1236 = vsel %vm338, %v1170, 0
      %v1239 = vsel %vm338, %v1173, 0
      %v1242 = vsel %vm338, %v1176, 0
      %v1245 = vsel %vm338, %v1179, 0
      %v1248 = vsel %vm338, %v1182, 0
      %1250 = vmatprep.subr.mxu0 0.0
      %1251 = vmatpush1.msra.mxu0 %v1183
      %1252 = vmatprep.subr.mxu0 0.0
      %1253 = vmatpush1.msra.mxu0 %v1184
      %1254 = vmatprep.subr.mxu0 0.0
      %1255 = vmatpush1.msra.mxu0 %v1185
      %1256 = vmatprep.subr.mxu0 0.0
      %1257 = vmatpush1.msra.mxu0 %v1186
      %1258 = vmatprep.subr.mxu0 0.0
      %1259 = vmatpush1.msra.mxu0 %v1187
      %1260 = vmatprep.subr.mxu0 0.0
      %1261 = vmatpush1.msra.mxu0 %v1188
      %1262 = vmatprep.subr.mxu0 0.0
      %1263 = vmatpush1.msra.mxu0 %v1189
      %1264 = vmatprep.subr.mxu0 0.0
      %1265 = vmatpush1.msra.mxu0 %v1190
      %1266 = vmatprep.subr.mxu0 0.0
      %1267 = vmatpush1.msra.mxu0 %v1191
      %1268 = vmatprep.subr.mxu0 0.0
      %1269 = vmatpush1.msra.mxu0 %v1192
      %1270 = vmatprep.subr.mxu0 0.0
      %1271 = vmatpush1.msra.mxu0 %v1193
      %1272 = vmatprep.subr.mxu0 0.0
      %1273 = vmatpush1.msra.mxu0 %v1194
      %1274 = vmatprep.subr.mxu0 0.0
      %1275 = vmatpush1.msra.mxu0 %v1195
      %1276 = vmatprep.subr.mxu0 0.0
      %1277 = vmatpush1.msra.mxu0 %v1196
      %1278 = vmatprep.subr.mxu0 0.0
      %1279 = vmatpush1.msra.mxu0 %v1197
      %1280 = vmatprep.subr.mxu0 0.0
      %1281 = vmatpush1.msra.mxu0 %v1198
      %1282 = vmatprep.subr.mxu0 0.0
      %1283 = vmatpush1.msra.mxu0 %v1199
      %1284 = vmatprep.subr.mxu0 0.0
      %1285 = vmatpush1.msra.mxu0 %v1200
      %1286 = vmatprep.subr.mxu0 0.0
      %1287 = vmatpush1.msra.mxu0 %v1201
      %1288 = vmatprep.subr.mxu0 0.0
      %1289 = vmatpush1.msra.mxu0 %v1202
      %1290 = vmatprep.subr.mxu0 0.0
      %1291 = vmatpush1.msra.mxu0 %v1203
      %1292 = vmatprep.subr.mxu0 0.0
      %1293 = vmatpush1.msra.mxu0 %v1204
      %1294 = vmatprep.subr.mxu0 0.0
      %1295 = vmatpush1.msra.mxu0 %v1205
      %1296 = vmatprep.subr.mxu0 0.0
      %1297 = vmatpush1.msra.mxu0 %v1206
      %1298 = vmatprep.subr.mxu0 0.0
      %1299 = vmatpush1.msra.mxu0 %v1207
      %1300 = vmatprep.subr.mxu0 0.0
      %1301 = vmatpush1.msra.mxu0 %v1208
      %1302 = vmatprep.subr.mxu0 0.0
      %1303 = vmatpush1.msra.mxu0 %v1209
      %1304 = vmatprep.subr.mxu0 0.0
      %1305 = vmatpush1.msra.mxu0 %v1210
      %1306 = vmatprep.subr.mxu0 0.0
      %1307 = vmatpush1.msra.mxu0 %v1211
      %1308 = vmatprep.subr.mxu0 0.0
      %1309 = vmatpush1.msra.mxu0 %v1212
      %1310 = vmatprep.subr.mxu0 0.0
      %1311 = vmatpush1.msra.mxu0 %v1213
      %1312 = vmatprep.subr.mxu0 0.0
      %1313 = vmatpush1.msra.mxu0 %v1214
      %1314 = vmatprep.mubr.f32.mxu0 %v1160
      %1315 = vmatmul.mubr.f32.gmra.mrb[0].mxu0 %v1159
      %v1316 = vpop.f32.mrb[0].mxu0
      %v1317 = vadd.f32 %v1224, %v1316
      %v1318 = vpop.f32.mrb[0].mxu0
      %1319 = vmatprep.mubr.f32.mxu0 %v1163
      %1320 = vmatmul.mubr.f32.gmra.mrb[0].mxu0 %v1162
      %v1321 = vpop.f32.mrb[0].mxu0
      %v1322 = vadd.f32 %v1224, %v1321
      %v1323 = vpop.f32.mrb[0].mxu0
      %1324 = vmatprep.mubr.f32.mxu0 %v1166
      %1325 = vmatmul.mubr.f32.gmra.mrb[0].mxu0 %v1165
      %v1326 = vpop.f32.mrb[0].mxu0
      %v1327 = vadd.f32 %v1224, %v1326
      %v1328 = vpop.f32.mrb[0].mxu0
      %1329 = vmatprep.mubr.f32.mxu0 %v1169
      %1330 = vmatmul.mubr.f32.gmra.mrb[0].mxu0 %v1168
      %v1331 = vpop.f32.mrb[0].mxu0
      %v1332 = vadd.f32 %v1224, %v1331
      %v1333 = vpop.f32.mrb[0].mxu0
      %1334 = vmatprep.mubr.f32.mxu0 %v1172
      %1335 = vmatmul.mubr.f32.gmra.mrb[0].mxu0 %v1171
      %v1336 = vpop.f32.mrb[0].mxu0
      %v1337 = vadd.f32 %v1224, %v1336
      %v1338 = vpop.f32.mrb[0].mxu0
      %1339 = vmatprep.mubr.f32.mxu0 %v1175
      %1340 = vmatmul.mubr.f32.gmra.mrb[0].mxu0 %v1174
      %v1341 = vpop.f32.mrb[0].mxu0
      %v1342 = vadd.f32 %v1224, %v1341
      %v1343 = vpop.f32.mrb[0].mxu0
      %1344 = vmatprep.mubr.f32.mxu0 %v1178
      %1345 = vmatmul.mubr.f32.gmra.mrb[0].mxu0 %v1177
      %v1346 = vpop.f32.mrb[0].mxu0
      %v1347 = vadd.f32 %v1224, %v1346
      %v1348 = vpop.f32.mrb[0].mxu0
      %1349 = vmatprep.mubr.f32.mxu0 %v1181
      %1350 = vmatmul.mubr.f32.gmra.mrb[0].mxu0 %v1180
      %v1351 = vpop.f32.mrb[0].mxu0
      %v1352 = vadd.f32 %v1224, %v1351
      %v1353 = vpop.f32.mrb[0].mxu0
      %1354 = vdwg.mxu0
      %1355 = vmatprep.subr.mxu0 0.0
      %1356 = vmatpush1.msra.mxu0 %v1215
      %1357 = vmatprep.subr.mxu0 0.0
      %1358 = vmatpush1.msra.mxu0 %v1216
      %1359 = vmatprep.subr.mxu0 0.0
      %1360 = vmatpush1.msra.mxu0 %v1217
      %1361 = vmatprep.subr.mxu0 0.0
      %1362 = vmatpush1.msra.mxu0 %v1218
      %1363 = vmatprep.subr.mxu0 0.0
      %1364 = vmatpush1.msra.mxu0 0.0
      %1365 = vmatprep.subr.mxu0 0.0
      %1366 = vmatpush1.msra.mxu0 0.0
      %1367 = vmatprep.subr.mxu0 0.0
      %1368 = vmatpush1.msra.mxu0 0.0
      %1369 = vmatprep.subr.mxu0 0.0
      %1370 = vmatpush1.msra.mxu0 0.0
      %1371 = vmatprep.subr.mxu0 0.0
      %1372 = vmatpush1.msra.mxu0 0.0
      %1373 = vmatprep.subr.mxu0 0.0
      %1374 = vmatpush1.msra.mxu0 0.0
      %1375 = vmatprep.subr.mxu0 0.0
      %1376 = vmatpush1.msra.mxu0 0.0
      %1377 = vmatprep.subr.mxu0 0.0
      %1378 = vmatpush1.msra.mxu0 0.0
      %1379 = vmatprep.subr.mxu0 0.0
      %1380 = vmatpush1.msra.mxu0 0.0
      %1381 = vmatprep.subr.mxu0 0.0
      %1382 = vmatpush1.msra.mxu0 0.0
      %1383 = vmatprep.subr.mxu0 0.0
      %1384 = vmatpush1.msra.mxu0 0.0
      %1385 = vmatprep.subr.mxu0 0.0
      %1386 = vmatpush1.msra.mxu0 0.0
      %1387 = vmatprep.subr.mxu0 0.0
      %1388 = vmatpush1.msra.mxu0 0.0
      %1389 = vmatprep.subr.mxu0 0.0
      %1390 = vmatpush1.msra.mxu0 0.0
      %1391 = vmatprep.subr.mxu0 0.0
      %1392 = vmatpush1.msra.mxu0 0.0
      %1393 = vmatprep.subr.mxu0 0.0
      %1394 = vmatpush1.msra.mxu0 0.0
      %1395 = vmatprep.subr.mxu0 0.0
      %1396 = vmatpush1.msra.mxu0 0.0
      %1397 = vmatprep.subr.mxu0 0.0
      %1398 = vmatpush1.msra.mxu0 0.0
      %1399 = vmatprep.subr.mxu0 0.0
      %1400 = vmatpush1.msra.mxu0 0.0
      %1401 = vmatprep.subr.mxu0 0.0
      %1402 = vmatpush1.msra.mxu0 0.0
      %1403 = vmatprep.subr.mxu0 0.0
      %1404 = vmatpush1.msra.mxu0 0.0
      %1405 = vmatprep.subr.mxu0 0.0
      %1406 = vmatpush1.msra.mxu0 0.0
      %1407 = vmatprep.subr.mxu0 0.0
      %1408 = vmatpush1.msra.mxu0 0.0
      %1409 = vmatprep.subr.mxu0 0.0
      %1410 = vmatpush1.msra.mxu0 0.0
      %1411 = vmatprep.subr.mxu0 0.0
      %1412 = vmatpush1.msra.mxu0 0.0
      %1413 = vmatprep.subr.mxu0 0.0
      %1414 = vmatpush1.msra.mxu0 0.0
      %1415 = vmatprep.subr.mxu0 0.0
      %1416 = vmatpush1.msra.mxu0 0.0
      %1417 = vmatprep.subr.mxu0 0.0
      %1418 = vmatpush1.msra.mxu0 0.0
      %1419 = vmatprep.mubr.f32.mxu0 0.0
      %1420 = vmatmul.mubr.f32.gmra.mrb[0].mxu0 %v1227
      %v1421 = vpop.f32.mrb[0].mxu0
      %v1422 = vadd.f32 %v1317, %v1421
      %v1423 = vpop.f32.mrb[0].mxu0
      %1424 = vmatprep.mubr.f32.mxu0 0.0
      %1425 = vmatmul.mubr.f32.gmra.mrb[0].mxu0 %v1230
      %v1426 = vpop.f32.mrb[0].mxu0
      %v1427 = vadd.f32 %v1322, %v1426
      %v1428 = vpop.f32.mrb[0].mxu0
      %1429 = vmatprep.mubr.f32.mxu0 0.0
      %1430 = vmatmul.mubr.f32.gmra.mrb[0].mxu0 %v1233
      %v1431 = vpop.f32.mrb[0].mxu0
      %v1432 = vadd.f32 %v1327, %v1431
      %v1433 = vpop.f32.mrb[0].mxu0
      %1434 = vmatprep.mubr.f32.mxu0 0.0
      %1435 = vmatmul.mubr.f32.gmra.mrb[0].mxu0 %v1236
      %v1436 = vpop.f32.mrb[0].mxu0
      %v1437 = vadd.f32 %v1332, %v1436
      %v1438 = vpop.f32.mrb[0].mxu0
      %1439 = vmatprep.mubr.f32.mxu0 0.0
      %1440 = vmatmul.mubr.f32.gmra.mrb[0].mxu0 %v1239
      %v1441 = vpop.f32.mrb[0].mxu0
      %v1442 = vadd.f32 %v1337, %v1441
      %v1443 = vpop.f32.mrb[0].mxu0
      %1444 = vmatprep.mubr.f32.mxu0 0.0
      %1445 = vmatmul.mubr.f32.gmra.mrb[0].mxu0 %v1242
      %v1446 = vpop.f32.mrb[0].mxu0
      %v1447 = vadd.f32 %v1342, %v1446
      %v1448 = vpop.f32.mrb[0].mxu0
      %1449 = vmatprep.mubr.f32.mxu0 0.0
      %1450 = vmatmul.mubr.f32.gmra.mrb[0].mxu0 %v1245
      %v1451 = vpop.f32.mrb[0].mxu0
      %v1452 = vadd.f32 %v1347, %v1451
      %v1453 = vpop.f32.mrb[0].mxu0
      %1454 = vmatprep.mubr.f32.mxu0 0.0
      %1455 = vmatmul.mubr.f32.gmra.mrb[0].mxu0 %v1248
      %v1456 = vpop.f32.mrb[0].mxu0
      %v1457 = vadd.f32 %v1352, %v1456
      %v1458 = vpop.f32.mrb[0].mxu0
      %1459 = vdwg.mxu0
      %v1460 = vmax.f32 %v1422, 0.0
      %v1461 = vmax.f32 %v1427, 0.0
      %v1462 = vmax.f32 %v1432, 0.0
      %v1463 = vmax.f32 %v1437, 0.0
      %v1464 = vmax.f32 %v1442, 0.0
      %v1465 = vmax.f32 %v1447, 0.0
      %v1466 = vmax.f32 %v1452, 0.0
      %v1467 = vmax.f32 %v1457, 0.0
      %v1475 = vrot.slane %v1460, 7
      %v1476 = vrot.slane %v1461, 7
      %v1477 = vrot.slane %v1462, 7
      %v1478 = vrot.slane %v1463, 7
      %v1479 = vrot.slane %v1464, 7
      %v1480 = vrot.slane %v1465, 7
      %v1481 = vrot.slane %v1466, 7
      %1489 = vst.msk [vmem:[%s390] sm:$0xfe] %vm391, %v1475
      %1490 = vst.msk [vmem:[%s390 + $0x18] sm:$0xfe] %vm391, %v1476
      %1491 = vst.msk [vmem:[%s390 + $0x30] sm:$0xfe] %vm391, %v1477
      %1492 = vst.msk [vmem:[%s390 + $0x48] sm:$0xfe] %vm391, %v1478
      %1493 = vst.msk [vmem:[%s390 + $0x60] sm:$0xfe] %vm391, %v1479
      %1494 = vst.msk [vmem:[%s390 + $0x78] sm:$0xfe] %vm391, %v1480
      %1495 = vst.msk [vmem:[%s390 + $0x90] sm:$0xfe] %vm391, %v1481
      %1496 = vrot.lane.b32.xlu0 %v1460, 32
      %v1497 = vpop.permute.xlu0 %1496
      %1498 = vrot.lane.b32.xlu0 %v1461, 32
      %v1499 = vpop.permute.xlu0 %1498
      %1500 = vrot.lane.b32.xlu0 %v1462, 32
      %v1501 = vpop.permute.xlu0 %1500
      %1502 = vrot.lane.b32.xlu0 %v1463, 32
      %v1503 = vpop.permute.xlu0 %1502
      %1504 = vrot.lane.b32.xlu0 %v1464, 32
      %v1505 = vpop.permute.xlu0 %1504
      %1506 = vrot.lane.b32.xlu0 %v1465, 32
      %v1507 = vpop.permute.xlu0 %1506
      %1508 = vrot.lane.b32.xlu0 %v1466, 32
      %v1509 = vpop.permute.xlu0 %1508
      %1517 = vst.msk [vmem:[%s390] sm:$0xff] %vm420, %v1497
      %1518 = vst.msk [vmem:[%s390 + $0x18] sm:$0xff] %vm420, %v1499
      %1519 = vst.msk [vmem:[%s390 + $0x30] sm:$0xff] %vm420, %v1501
      %1520 = vst.msk [vmem:[%s390 + $0x48] sm:$0xff] %vm420, %v1503
      %1521 = vst.msk [vmem:[%s390 + $0x60] sm:$0xff] %vm420, %v1505
      %1522 = vst.msk [vmem:[%s390 + $0x78] sm:$0xff] %vm420, %v1507
      %1523 = vst.msk [vmem:[%s390 + $0x90] sm:$0xff] %vm420, %v1509
      %v1524 = vrot.slane %v1460, 1
      %v1525 = vrot.slane %v1461, 1
      %v1526 = vrot.slane %v1462, 1
      %v1527 = vrot.slane %v1463, 1
      %v1528 = vrot.slane %v1464, 1
      %v1529 = vrot.slane %v1465, 1
      %v1530 = vrot.slane %v1466, 1
      %1531 = vrot.lane.b32.xlu0 %v1524, 64
      %v1532 = vpop.permute.xlu0 %1531
      %1533 = vrot.lane.b32.xlu0 %v1525, 64
      %v1534 = vpop.permute.xlu0 %1533
      %1535 = vrot.lane.b32.xlu0 %v1526, 64
      %v1536 = vpop.permute.xlu0 %1535
      %1537 = vrot.lane.b32.xlu0 %v1527, 64
      %v1538 = vpop.permute.xlu0 %1537
      %1539 = vrot.lane.b32.xlu0 %v1528, 64
      %v1540 = vpop.permute.xlu0 %1539
      %1541 = vrot.lane.b32.xlu0 %v1529, 64
      %v1542 = vpop.permute.xlu0 %1541
      %1543 = vrot.lane.b32.xlu0 %v1530, 64
      %v1544 = vpop.permute.xlu0 %1543
      %1552 = vst.msk [vmem:[%s390] sm:$0x7f] %vm456, %v1532
      %1553 = vst.msk [vmem:[%s390 + $0x18] sm:$0x7f] %vm456, %v1534
      %1554 = vst.msk [vmem:[%s390 + $0x30] sm:$0x7f] %vm456, %v1536
      %1555 = vst.msk [vmem:[%s390 + $0x48] sm:$0x7f] %vm456, %v1538
      %1556 = vst.msk [vmem:[%s390 + $0x60] sm:$0x7f] %vm456, %v1540
      %1557 = vst.msk [vmem:[%s390 + $0x78] sm:$0x7f] %vm456, %v1542
      %1558 = vst.msk [vmem:[%s390 + $0x90] sm:$0x7f] %vm456, %v1544
      %v1560 = vrot.slane %v1467, 7
      %1561 = vrot.lane.b32.xlu0 %v1475, 96
      %v1562 = vpop.permute.xlu0 %1561
      %1563 = vrot.lane.b32.xlu0 %v1476, 96
      %v1564 = vpop.permute.xlu0 %1563
      %1565 = vrot.lane.b32.xlu0 %v1477, 96
      %v1566 = vpop.permute.xlu0 %1565
      %1567 = vrot.lane.b32.xlu0 %v1478, 96
      %v1568 = vpop.permute.xlu0 %1567
      %1569 = vrot.lane.b32.xlu0 %v1479, 96
      %v1570 = vpop.permute.xlu0 %1569
      %1571 = vrot.lane.b32.xlu0 %v1480, 96
      %v1572 = vpop.permute.xlu0 %1571
      %1573 = vrot.lane.b32.xlu0 %v1481, 96
      %v1574 = vpop.permute.xlu0 %1573
      %1575 = vrot.lane.b32.xlu0 %v1560, 96
      %v1576 = vpop.permute.xlu0 %1575
      %1585 = vst.msk [vmem:[#allocation2] sm:$0xfe] %vm490, %v1562
      %1586 = vst.msk [vmem:[#allocation2 + $0x18] sm:$0xfe] %vm490, %v1564
      %1587 = vst.msk [vmem:[#allocation2 + $0x30] sm:$0xfe] %vm490, %v1566
      %1588 = vst.msk [vmem:[#allocation2 + $0x48] sm:$0xfe] %vm490, %v1568
      %1589 = vst.msk [vmem:[#allocation2 + $0x60] sm:$0xfe] %vm490, %v1570
      %1590 = vst.msk [vmem:[#allocation2 + $0x78] sm:$0xfe] %vm490, %v1572
      %1591 = vst.msk [vmem:[#allocation2 + $0x90] sm:$0xfe] %vm490, %v1574
      %1592 = vst.msk [vmem:[#allocation2 + $0xa8] sm:$0xfe] %vm490, %v1576
      %1593 = vst.msk [vmem:[#allocation2 + $0x8] sm:$0xff] %vm338, %v1460
      %1594 = vst.msk [vmem:[#allocation2 + $0x20] sm:$0xff] %vm338, %v1461
      %1595 = vst.msk [vmem:[#allocation2 + $0x38] sm:$0xff] %vm338, %v1462
      %1596 = vst.msk [vmem:[#allocation2 + $0x50] sm:$0xff] %vm338, %v1463
      %1597 = vst.msk [vmem:[#allocation2 + $0x68] sm:$0xff] %vm338, %v1464
      %1598 = vst.msk [vmem:[#allocation2 + $0x80] sm:$0xff] %vm338, %v1465
      %1599 = vst.msk [vmem:[#allocation2 + $0x98] sm:$0xff] %vm338, %v1466
      %1600 = vst.msk [vmem:[#allocation2 + $0xb0] sm:$0xff] %vm338, %v1467
      %v1601 = vrot.slane %v1467, 1
      %1602 = vrot.lane.b32.xlu0 %v1524, 32
      %v1603 = vpop.permute.xlu0 %1602
      %1604 = vrot.lane.b32.xlu0 %v1525, 32
      %v1605 = vpop.permute.xlu0 %1604
      %1606 = vrot.lane.b32.xlu0 %v1526, 32
      %v1607 = vpop.permute.xlu0 %1606
      %1608 = vrot.lane.b32.xlu0 %v1527, 32
      %v1609 = vpop.permute.xlu0 %1608
      %1610 = vrot.lane.b32.xlu0 %v1528, 32
      %v1611 = vpop.permute.xlu0 %1610
      %1612 = vrot.lane.b32.xlu0 %v1529, 32
      %v1613 = vpop.permute.xlu0 %1612
      %1614 = vrot.lane.b32.xlu0 %v1530, 32
      %v1615 = vpop.permute.xlu0 %1614
      %1616 = vrot.lane.b32.xlu0 %v1601, 32
      %v1617 = vpop.permute.xlu0 %1616
      %1626 = vst.msk [vmem:[#allocation2 + $0x8] sm:$0x7f] %vm532, %v1603
      %1627 = vst.msk [vmem:[#allocation2 + $0x20] sm:$0x7f] %vm532, %v1605
      %1628 = vst.msk [vmem:[#allocation2 + $0x38] sm:$0x7f] %vm532, %v1607
      %1629 = vst.msk [vmem:[#allocation2 + $0x50] sm:$0x7f] %vm532, %v1609
      %1630 = vst.msk [vmem:[#allocation2 + $0x68] sm:$0x7f] %vm532, %v1611
      %1631 = vst.msk [vmem:[#allocation2 + $0x80] sm:$0x7f] %vm532, %v1613
      %1632 = vst.msk [vmem:[#allocation2 + $0x98] sm:$0x7f] %vm532, %v1615
      %1633 = vst.msk [vmem:[#allocation2 + $0xb0] sm:$0x7f] %vm532, %v1617
      %1634 = vrot.lane.b32.xlu0 %v1476, 64
      %v1635 = vpop.permute.xlu0 %1634
      %1636 = vrot.lane.b32.xlu0 %v1477, 64
      %v1637 = vpop.permute.xlu0 %1636
      %1638 = vrot.lane.b32.xlu0 %v1478, 64
      %v1639 = vpop.permute.xlu0 %1638
      %1640 = vrot.lane.b32.xlu0 %v1479, 64
      %v1641 = vpop.permute.xlu0 %1640
      %1642 = vrot.lane.b32.xlu0 %v1480, 64
      %v1643 = vpop.permute.xlu0 %1642
      %1644 = vrot.lane.b32.xlu0 %v1481, 64
      %v1645 = vpop.permute.xlu0 %1644
      %1646 = vrot.lane.b32.xlu0 %v1560, 64
      %v1647 = vpop.permute.xlu0 %1646
      %1655 = vst.msk [vmem:[#allocation2 + $0x8] sm:$0xfe] %vm562, %v1635
      %1656 = vst.msk [vmem:[#allocation2 + $0x20] sm:$0xfe] %vm562, %v1637
      %1657 = vst.msk [vmem:[#allocation2 + $0x38] sm:$0xfe] %vm562, %v1639
      %1658 = vst.msk [vmem:[#allocation2 + $0x50] sm:$0xfe] %vm562, %v1641
      %1659 = vst.msk [vmem:[#allocation2 + $0x68] sm:$0xfe] %vm562, %v1643
      %1660 = vst.msk [vmem:[#allocation2 + $0x80] sm:$0xfe] %vm562, %v1645
      %1661 = vst.msk [vmem:[#allocation2 + $0x98] sm:$0xfe] %vm562, %v1647
      %1662 = vrot.lane.b32.xlu0 %v1461, 96
      %v1663 = vpop.permute.xlu0 %1662
      %1664 = vrot.lane.b32.xlu0 %v1462, 96
      %v1665 = vpop.permute.xlu0 %1664
      %1666 = vrot.lane.b32.xlu0 %v1463, 96
      %v1667 = vpop.permute.xlu0 %1666
      %1668 = vrot.lane.b32.xlu0 %v1464, 96
      %v1669 = vpop.permute.xlu0 %1668
      %1670 = vrot.lane.b32.xlu0 %v1465, 96
      %v1671 = vpop.permute.xlu0 %1670
      %1672 = vrot.lane.b32.xlu0 %v1466, 96
      %v1673 = vpop.permute.xlu0 %1672
      %1674 = vrot.lane.b32.xlu0 %v1467, 96
      %v1675 = vpop.permute.xlu0 %1674
      %1683 = vst.msk [vmem:[#allocation2 + $0x8] sm:$0xff] %vm591, %v1663
      %1684 = vst.msk [vmem:[#allocation2 + $0x20] sm:$0xff] %vm591, %v1665
      %1685 = vst.msk [vmem:[#allocation2 + $0x38] sm:$0xff] %vm591, %v1667
      %1686 = vst.msk [vmem:[#allocation2 + $0x50] sm:$0xff] %vm591, %v1669
      %1687 = vst.msk [vmem:[#allocation2 + $0x68] sm:$0xff] %vm591, %v1671
      %1688 = vst.msk [vmem:[#allocation2 + $0x80] sm:$0xff] %vm591, %v1673
      %1689 = vst.msk [vmem:[#allocation2 + $0x98] sm:$0xff] %vm591, %v1675
      %1697 = vst.msk [vmem:[#allocation2 + $0x10] sm:$0x7f] %vm606, %v1525
      %1698 = vst.msk [vmem:[#allocation2 + $0x28] sm:$0x7f] %vm606, %v1526
      %1699 = vst.msk [vmem:[#allocation2 + $0x40] sm:$0x7f] %vm606, %v1527
      %1700 = vst.msk [vmem:[#allocation2 + $0x58] sm:$0x7f] %vm606, %v1528
      %1701 = vst.msk [vmem:[#allocation2 + $0x70] sm:$0x7f] %vm606, %v1529
      %1702 = vst.msk [vmem:[#allocation2 + $0x88] sm:$0x7f] %vm606, %v1530
      %1703 = vst.msk [vmem:[#allocation2 + $0xa0] sm:$0x7f] %vm606, %v1601
      %v1704 = vld [vmem:[#allocation2] sm:$0xff]
      %v1705 = vld [vmem:[#allocation2 + $0x8] sm:$0xff]
      %v1706 = vld [vmem:[#allocation2 + $0x10] sm:$0xff]
      %v1707 = vld [vmem:[#allocation2 + $0x18] sm:$0xff]
      %v1708 = vld [vmem:[#allocation2 + $0x20] sm:$0xff]
      %v1709 = vld [vmem:[#allocation2 + $0x28] sm:$0xff]
      %v1710 = vld [vmem:[#allocation2 + $0x30] sm:$0xff]
      %v1711 = vld [vmem:[#allocation2 + $0x38] sm:$0xff]
      %v1712 = vld [vmem:[#allocation2 + $0x40] sm:$0xff]
      %v1713 = vld [vmem:[#allocation2 + $0x48] sm:$0xff]
      %v1714 = vld [vmem:[#allocation2 + $0x50] sm:$0xff]
      %v1715 = vld [vmem:[#allocation2 + $0x58] sm:$0xff]
      %v1716 = vld [vmem:[#allocation2 + $0x60] sm:$0xff]
      %v1717 = vld [vmem:[#allocation2 + $0x68] sm:$0xff]
      %v1718 = vld [vmem:[#allocation2 + $0x70] sm:$0xff]
      %v1719 = vld [vmem:[#allocation2 + $0x78] sm:$0xff]
      %v1720 = vld [vmem:[#allocation2 + $0x80] sm:$0xff]
      %v1721 = vld [vmem:[#allocation2 + $0x88] sm:$0xff]
      %v1722 = vld [vmem:[#allocation2 + $0x90] sm:$0xff]
      %v1723 = vld [vmem:[#allocation2 + $0x98] sm:$0xff]
      %v1724 = vld [vmem:[#allocation2 + $0xa0] sm:$0xff]
      %v1725 = vld [vmem:[#allocation2 + $0xa8] sm:$0xff]
      %v1726 = vld [vmem:[#allocation2 + $0xb0] sm:$0xff]
      %v1727 = vld [vmem:[#allocation2 + $0xb8] sm:$0xff]
      %v1728 = vld [vmem:[%s5] sm:$0xff]
      %v1729 = vld [vmem:[%s5 + $0x8] sm:$0xff]
      %v1730 = vld [vmem:[%s5 + $0x10] sm:$0xff]
      %v1731 = vld [vmem:[%s5 + $0x18] sm:$0xff]
      %v1732 = vld [vmem:[%s5 + $0x20] sm:$0xff]
      %v1733 = vld [vmem:[%s5 + $0x28] sm:$0xff]
      %v1734 = vld [vmem:[%s5 + $0x30] sm:$0xff]
      %v1735 = vld [vmem:[%s5 + $0x38] sm:$0xff]
      %v1736 = vld [vmem:[%s5 + $0x40] sm:$0xff]
      %v1737 = vld [vmem:[%s5 + $0x48] sm:$0xff]
      %v1738 = vld [vmem:[%s5 + $0x50] sm:$0xff]
      %v1739 = vld [vmem:[%s5 + $0x58] sm:$0xff]
      %v1740 = vld [vmem:[%s5 + $0x60] sm:$0xff]
      %v1741 = vld [vmem:[%s5 + $0x68] sm:$0xff]
      %v1742 = vld [vmem:[%s5 + $0x70] sm:$0xff]
      %v1743 = vld [vmem:[%s5 + $0x78] sm:$0xff]
      %v1744 = vld [vmem:[%s5 + $0x80] sm:$0xff]
      %v1745 = vld [vmem:[%s5 + $0x88] sm:$0xff]
      %v1746 = vld [vmem:[%s5 + $0x90] sm:$0xff]
      %v1747 = vld [vmem:[%s5 + $0x98] sm:$0xff]
      %v1748 = vld [vmem:[%s5 + $0xa0] sm:$0xff]
      %v1749 = vld [vmem:[%s5 + $0xa8] sm:$0xff]
      %v1750 = vld [vmem:[%s5 + $0xb0] sm:$0xff]
      %v1751 = vld [vmem:[%s5 + $0xb8] sm:$0xff]
      %v1752 = vld [vmem:[%s5 + $0xc0] sm:$0xff]
      %v1753 = vld [vmem:[%s5 + $0xc8] sm:$0xff]
      %v1754 = vld [vmem:[%s5 + $0xd0] sm:$0xff]
      %v1755 = vld [vmem:[%s5 + $0xd8] sm:$0xff]
      %v1756 = vld [vmem:[%s5 + $0xe0] sm:$0xff]
      %v1757 = vld [vmem:[%s5 + $0xe8] sm:$0xff]
      %v1758 = vld [vmem:[%s5 + $0xf0] sm:$0xff]
      %v1759 = vld [vmem:[%s5 + $0xf8] sm:$0xff]
      %v1760 = vld [vmem:[%s5 + $0x100] sm:$0xff]
      %v1761 = vld [vmem:[%s5 + $0x108] sm:$0xff]
      %v1762 = vld [vmem:[%s5 + $0x110] sm:$0xff]
      %v1763 = vld [vmem:[%s5 + $0x118] sm:$0xff]
      %v1764 = vld [vmem:[%s6] sm:$0x1]
      %v1766 = vlaneseq
      %v1767 = vshrl.u32 %v1766, 7
      %v1768 = vsub.s32 0, %v1767
      %v1769 = vrot.slane %v1764, %v1768
      %v1772 = vsel %vm338, %v1706, 0
      %v1775 = vsel %vm338, %v1709, 0
      %v1778 = vsel %vm338, %v1712, 0
      %v1781 = vsel %vm338, %v1715, 0
      %v1784 = vsel %vm338, %v1718, 0
      %v1787 = vsel %vm338, %v1721, 0
      %v1790 = vsel %vm338, %v1724, 0
      %v1793 = vsel %vm338, %v1727, 0
      %1795 = vmatprep.subr.mxu0 0.0
      %1796 = vmatpush1.msra.mxu0 %v1728
      %1797 = vmatprep.subr.mxu0 0.0
      %1798 = vmatpush1.msra.mxu0 %v1729
      %1799 = vmatprep.subr.mxu0 0.0
      %1800 = vmatpush1.msra.mxu0 %v1730
      %1801 = vmatprep.subr.mxu0 0.0
      %1802 = vmatpush1.msra.mxu0 %v1731
      %1803 = vmatprep.subr.mxu0 0.0
      %1804 = vmatpush1.msra.mxu0 %v1732
      %1805 = vmatprep.subr.mxu0 0.0
      %1806 = vmatpush1.msra.mxu0 %v1733
      %1807 = vmatprep.subr.mxu0 0.0
      %1808 = vmatpush1.msra.mxu0 %v1734
      %1809 = vmatprep.subr.mxu0 0.0
      %1810 = vmatpush1.msra.mxu0 %v1735
      %1811 = vmatprep.subr.mxu0 0.0
      %1812 = vmatpush1.msra.mxu0 %v1736
      %1813 = vmatprep.subr.mxu0 0.0
      %1814 = vmatpush1.msra.mxu0 %v1737
      %1815 = vmatprep.subr.mxu0 0.0
      %1816 = vmatpush1.msra.mxu0 %v1738
      %1817 = vmatprep.subr.mxu0 0.0
      %1818 = vmatpush1.msra.mxu0 %v1739
      %1819 = vmatprep.subr.mxu0 0.0
      %1820 = vmatpush1.msra.mxu0 %v1740
      %1821 = vmatprep.subr.mxu0 0.0
      %1822 = vmatpush1.msra.mxu0 %v1741
      %1823 = vmatprep.subr.mxu0 0.0
      %1824 = vmatpush1.msra.mxu0 %v1742
      %1825 = vmatprep.subr.mxu0 0.0
      %1826 = vmatpush1.msra.mxu0 %v1743
      %1827 = vmatprep.subr.mxu0 0.0
      %1828 = vmatpush1.msra.mxu0 %v1744
      %1829 = vmatprep.subr.mxu0 0.0
      %1830 = vmatpush1.msra.mxu0 %v1745
      %1831 = vmatprep.subr.mxu0 0.0
      %1832 = vmatpush1.msra.mxu0 %v1746
      %1833 = vmatprep.subr.mxu0 0.0
      %1834 = vmatpush1.msra.mxu0 %v1747
      %1835 = vmatprep.subr.mxu0 0.0
      %1836 = vmatpush1.msra.mxu0 %v1748
      %1837 = vmatprep.subr.mxu0 0.0
      %1838 = vmatpush1.msra.mxu0 %v1749
      %1839 = vmatprep.subr.mxu0 0.0
      %1840 = vmatpush1.msra.mxu0 %v1750
      %1841 = vmatprep.subr.mxu0 0.0
      %1842 = vmatpush1.msra.mxu0 %v1751
      %1843 = vmatprep.subr.mxu0 0.0
      %1844 = vmatpush1.msra.mxu0 %v1752
      %1845 = vmatprep.subr.mxu0 0.0
      %1846 = vmatpush1.msra.mxu0 %v1753
      %1847 = vmatprep.subr.mxu0 0.0
      %1848 = vmatpush1.msra.mxu0 %v1754
      %1849 = vmatprep.subr.mxu0 0.0
      %1850 = vmatpush1.msra.mxu0 %v1755
      %1851 = vmatprep.subr.mxu0 0.0
      %1852 = vmatpush1.msra.mxu0 %v1756
      %1853 = vmatprep.subr.mxu0 0.0
      %1854 = vmatpush1.msra.mxu0 %v1757
      %1855 = vmatprep.subr.mxu0 0.0
      %1856 = vmatpush1.msra.mxu0 %v1758
      %1857 = vmatprep.subr.mxu0 0.0
      %1858 = vmatpush1.msra.mxu0 %v1759
      %1859 = vmatprep.mubr.f32.mxu0 %v1705
      %1860 = vmatmul.mubr.f32.gmra.mrb[0].mxu0 %v1704
      %v1861 = vpop.f32.mrb[0].mxu0
      %v1862 = vadd.f32 %v1769, %v1861
      %v1863 = vpop.f32.mrb[0].mxu0
      %1864 = vmatprep.mubr.f32.mxu0 %v1708
      %1865 = vmatmul.mubr.f32.gmra.mrb[0].mxu0 %v1707
      %v1866 = vpop.f32.mrb[0].mxu0
      %v1867 = vadd.f32 %v1769, %v1866
      %v1868 = vpop.f32.mrb[0].mxu0
      %1869 = vmatprep.mubr.f32.mxu0 %v1711
      %1870 = vmatmul.mubr.f32.gmra.mrb[0].mxu0 %v1710
      %v1871 = vpop.f32.mrb[0].mxu0
      %v1872 = vadd.f32 %v1769, %v1871
      %v1873 = vpop.f32.mrb[0].mxu0
      %1874 = vmatprep.mubr.f32.mxu0 %v1714
      %1875 = vmatmul.mubr.f32.gmra.mrb[0].mxu0 %v1713
      %v1876 = vpop.f32.mrb[0].mxu0
      %v1877 = vadd.f32 %v1769, %v1876
      %v1878 = vpop.f32.mrb[0].mxu0
      %1879 = vmatprep.mubr.f32.mxu0 %v1717
      %1880 = vmatmul.mubr.f32.gmra.mrb[0].mxu0 %v1716
      %v1881 = vpop.f32.mrb[0].mxu0
      %v1882 = vadd.f32 %v1769, %v1881
      %v1883 = vpop.f32.mrb[0].mxu0
      %1884 = vmatprep.mubr.f32.mxu0 %v1720
      %1885 = vmatmul.mubr.f32.gmra.mrb[0].mxu0 %v1719
      %v1886 = vpop.f32.mrb[0].mxu0
      %v1887 = vadd.f32 %v1769, %v1886
      %v1888 = vpop.f32.mrb[0].mxu0
      %1889 = vmatprep.mubr.f32.mxu0 %v1723
      %1890 = vmatmul.mubr.f32.gmra.mrb[0].mxu0 %v1722
      %v1891 = vpop.f32.mrb[0].mxu0
      %v1892 = vadd.f32 %v1769, %v1891
      %v1893 = vpop.f32.mrb[0].mxu0
      %1894 = vmatprep.mubr.f32.mxu0 %v1726
      %1895 = vmatmul.mubr.f32.gmra.mrb[0].mxu0 %v1725
      %v1896 = vpop.f32.mrb[0].mxu0
      %v1897 = vadd.f32 %v1769, %v1896
      %v1898 = vpop.f32.mrb[0].mxu0
      %1899 = vdwg.mxu0
      %1900 = vmatprep.subr.mxu0 0.0
      %1901 = vmatpush1.msra.mxu0 %v1760
      %1902 = vmatprep.subr.mxu0 0.0
      %1903 = vmatpush1.msra.mxu0 %v1761
      %1904 = vmatprep.subr.mxu0 0.0
      %1905 = vmatpush1.msra.mxu0 %v1762
      %1906 = vmatprep.subr.mxu0 0.0
      %1907 = vmatpush1.msra.mxu0 %v1763
      %1908 = vmatprep.subr.mxu0 0.0
      %1909 = vmatpush1.msra.mxu0 0.0
      %1910 = vmatprep.subr.mxu0 0.0
      %1911 = vmatpush1.msra.mxu0 0.0
      %1912 = vmatprep.subr.mxu0 0.0
      %1913 = vmatpush1.msra.mxu0 0.0
      %1914 = vmatprep.subr.mxu0 0.0
      %1915 = vmatpush1.msra.mxu0 0.0
      %1916 = vmatprep.subr.mxu0 0.0
      %1917 = vmatpush1.msra.mxu0 0.0
      %1918 = vmatprep.subr.mxu0 0.0
      %1919 = vmatpush1.msra.mxu0 0.0
      %1920 = vmatprep.subr.mxu0 0.0
      %1921 = vmatpush1.msra.mxu0 0.0
      %1922 = vmatprep.subr.mxu0 0.0
      %1923 = vmatpush1.msra.mxu0 0.0
      %1924 = vmatprep.subr.mxu0 0.0
      %1925 = vmatpush1.msra.mxu0 0.0
      %1926 = vmatprep.subr.mxu0 0.0
      %1927 = vmatpush1.msra.mxu0 0.0
      %1928 = vmatprep.subr.mxu0 0.0
      %1929 = vmatpush1.msra.mxu0 0.0
      %1930 = vmatprep.subr.mxu0 0.0
      %1931 = vmatpush1.msra.mxu0 0.0
      %1932 = vmatprep.subr.mxu0 0.0
      %1933 = vmatpush1.msra.mxu0 0.0
      %1934 = vmatprep.subr.mxu0 0.0
      %1935 = vmatpush1.msra.mxu0 0.0
      %1936 = vmatprep.subr.mxu0 0.0
      %1937 = vmatpush1.msra.mxu0 0.0
      %1938 = vmatprep.subr.mxu0 0.0
      %1939 = vmatpush1.msra.mxu0 0.0
      %1940 = vmatprep.subr.mxu0 0.0
      %1941 = vmatpush1.msra.mxu0 0.0
      %1942 = vmatprep.subr.mxu0 0.0
      %1943 = vmatpush1.msra.mxu0 0.0
      %1944 = vmatprep.subr.mxu0 0.0
      %1945 = vmatpush1.msra.mxu0 0.0
      %1946 = vmatprep.subr.mxu0 0.0
      %1947 = vmatpush1.msra.mxu0 0.0
      %1948 = vmatprep.subr.mxu0 0.0
      %1949 = vmatpush1.msra.mxu0 0.0
      %1950 = vmatprep.subr.mxu0 0.0
      %1951 = vmatpush1.msra.mxu0 0.0
      %1952 = vmatprep.subr.mxu0 0.0
      %1953 = vmatpush1.msra.mxu0 0.0
      %1954 = vmatprep.subr.mxu0 0.0
      %1955 = vmatpush1.msra.mxu0 0.0
      %1956 = vmatprep.subr.mxu0 0.0
      %1957 = vmatpush1.msra.mxu0 0.0
      %1958 = vmatprep.subr.mxu0 0.0
      %1959 = vmatpush1.msra.mxu0 0.0
      %1960 = vmatprep.subr.mxu0 0.0
      %1961 = vmatpush1.msra.mxu0 0.0
      %1962 = vmatprep.subr.mxu0 0.0
      %1963 = vmatpush1.msra.mxu0 0.0
      %1964 = vmatprep.mubr.f32.mxu0 0.0
      %1965 = vmatmul.mubr.f32.gmra.mrb[0].mxu0 %v1772
      %v1966 = vpop.f32.mrb[0].mxu0
      %v1967 = vadd.f32 %v1862, %v1966
      %v1968 = vpop.f32.mrb[0].mxu0
      %1969 = vmatprep.mubr.f32.mxu0 0.0
      %1970 = vmatmul.mubr.f32.gmra.mrb[0].mxu0 %v1775
      %v1971 = vpop.f32.mrb[0].mxu0
      %v1972 = vadd.f32 %v1867, %v1971
      %v1973 = vpop.f32.mrb[0].mxu0
      %1974 = vmatprep.mubr.f32.mxu0 0.0
      %1975 = vmatmul.mubr.f32.gmra.mrb[0].mxu0 %v1778
      %v1976 = vpop.f32.mrb[0].mxu0
      %v1977 = vadd.f32 %v1872, %v1976
      %v1978 = vpop.f32.mrb[0].mxu0
      %1979 = vmatprep.mubr.f32.mxu0 0.0
      %1980 = vmatmul.mubr.f32.gmra.mrb[0].mxu0 %v1781
      %v1981 = vpop.f32.mrb[0].mxu0
      %v1982 = vadd.f32 %v1877, %v1981
      %v1983 = vpop.f32.mrb[0].mxu0
      %1984 = vmatprep.mubr.f32.mxu0 0.0
      %1985 = vmatmul.mubr.f32.gmra.mrb[0].mxu0 %v1784
      %v1986 = vpop.f32.mrb[0].mxu0
      %v1987 = vadd.f32 %v1882, %v1986
      %v1988 = vpop.f32.mrb[0].mxu0
      %1989 = vmatprep.mubr.f32.mxu0 0.0
      %1990 = vmatmul.mubr.f32.gmra.mrb[0].mxu0 %v1787
      %v1991 = vpop.f32.mrb[0].mxu0
      %v1992 = vadd.f32 %v1887, %v1991
      %v1993 = vpop.f32.mrb[0].mxu0
      %1994 = vmatprep.mubr.f32.mxu0 0.0
      %1995 = vmatmul.mubr.f32.gmra.mrb[0].mxu0 %v1790
      %v1996 = vpop.f32.mrb[0].mxu0
      %v1997 = vadd.f32 %v1892, %v1996
      %v1998 = vpop.f32.mrb[0].mxu0
      %1999 = vmatprep.mubr.f32.mxu0 0.0
      %2000 = vmatmul.mubr.f32.gmra.mrb[0].mxu0 %v1793
      %v2001 = vpop.f32.mrb[0].mxu0
      %v2002 = vadd.f32 %v1897, %v2001
      %v2003 = vpop.f32.mrb[0].mxu0
      %2004 = vdwg.mxu0
      %v2005 = vmax.f32 %v1967, 0.0
      %v2006 = vmax.f32 %v1972, 0.0
      %v2007 = vmax.f32 %v1977, 0.0
      %v2008 = vmax.f32 %v1982, 0.0
      %v2009 = vmax.f32 %v1987, 0.0
      %v2010 = vmax.f32 %v1992, 0.0
      %v2011 = vmax.f32 %v1997, 0.0
      %v2012 = vmax.f32 %v2002, 0.0
      %v2013 = vld [vmem:[%s7] sm:$0xff]
      %v2014 = vld [vmem:[%s7 + $0x8] sm:$0xff]
      %v2015 = vld [vmem:[%s7 + $0x10] sm:$0xff]
      %v2016 = vld [vmem:[%s7 + $0x18] sm:$0xff]
      %v2017 = vld [vmem:[#allocation3] sm:$0x1]
      %v2019 = vlaneseq
      %v2020 = vshrl.u32 %v2019, 7
      %v2021 = vsub.s32 0, %v2020
      %v2022 = vrot.slane %v2017, %v2021
      %v2025 = vsel %vm338, %v2005, 0
      %v2028 = vsel %vm338, %v2006, 0
      %v2031 = vsel %vm338, %v2007, 0
      %v2034 = vsel %vm338, %v2008, 0
      %v2037 = vsel %vm338, %v2009, 0
      %v2040 = vsel %vm338, %v2010, 0
      %v2043 = vsel %vm338, %v2011, 0
      %v2046 = vsel %vm338, %v2012, 0
      %2048 = vmatprep.subr.mxu0 0.0
      %2049 = vmatpush1.msra.mxu0 %v2013
      %2050 = vmatprep.subr.mxu0 0.0
      %2051 = vmatpush1.msra.mxu0 %v2014
      %2052 = vmatprep.subr.mxu0 0.0
      %2053 = vmatpush1.msra.mxu0 %v2015
      %2054 = vmatprep.subr.mxu0 0.0
      %2055 = vmatpush1.msra.mxu0 %v2016
      %2056 = vmatprep.subr.mxu0 0.0
      %2057 = vmatpush1.msra.mxu0 0.0
      %2058 = vmatprep.subr.mxu0 0.0
      %2059 = vmatpush1.msra.mxu0 0.0
      %2060 = vmatprep.subr.mxu0 0.0
      %2061 = vmatpush1.msra.mxu0 0.0
      %2062 = vmatprep.subr.mxu0 0.0
      %2063 = vmatpush1.msra.mxu0 0.0
      %2064 = vmatprep.subr.mxu0 0.0
      %2065 = vmatpush1.msra.mxu0 0.0
      %2066 = vmatprep.subr.mxu0 0.0
      %2067 = vmatpush1.msra.mxu0 0.0
      %2068 = vmatprep.subr.mxu0 0.0
      %2069 = vmatpush1.msra.mxu0 0.0
      %2070 = vmatprep.subr.mxu0 0.0
      %2071 = vmatpush1.msra.mxu0 0.0
      %2072 = vmatprep.subr.mxu0 0.0
      %2073 = vmatpush1.msra.mxu0 0.0
      %2074 = vmatprep.subr.mxu0 0.0
      %2075 = vmatpush1.msra.mxu0 0.0
      %2076 = vmatprep.subr.mxu0 0.0
      %2077 = vmatpush1.msra.mxu0 0.0
      %2078 = vmatprep.subr.mxu0 0.0
      %2079 = vmatpush1.msra.mxu0 0.0
      %2080 = vmatprep.subr.mxu0 0.0
      %2081 = vmatpush1.msra.mxu0 0.0
      %2082 = vmatprep.subr.mxu0 0.0
      %2083 = vmatpush1.msra.mxu0 0.0
      %2084 = vmatprep.subr.mxu0 0.0
      %2085 = vmatpush1.msra.mxu0 0.0
      %2086 = vmatprep.subr.mxu0 0.0
      %2087 = vmatpush1.msra.mxu0 0.0
      %2088 = vmatprep.subr.mxu0 0.0
      %2089 = vmatpush1.msra.mxu0 0.0
      %2090 = vmatprep.subr.mxu0 0.0
      %2091 = vmatpush1.msra.mxu0 0.0
      %2092 = vmatprep.subr.mxu0 0.0
      %2093 = vmatpush1.msra.mxu0 0.0
      %2094 = vmatprep.subr.mxu0 0.0
      %2095 = vmatpush1.msra.mxu0 0.0
      %2096 = vmatprep.subr.mxu0 0.0
      %2097 = vmatpush1.msra.mxu0 0.0
      %2098 = vmatprep.subr.mxu0 0.0
      %2099 = vmatpush1.msra.mxu0 0.0
      %2100 = vmatprep.subr.mxu0 0.0
      %2101 = vmatpush1.msra.mxu0 0.0
      %2102 = vmatprep.subr.mxu0 0.0
      %2103 = vmatpush1.msra.mxu0 0.0
      %2104 = vmatprep.subr.mxu0 0.0
      %2105 = vmatpush1.msra.mxu0 0.0
      %2106 = vmatprep.subr.mxu0 0.0
      %2107 = vmatpush1.msra.mxu0 0.0
      %2108 = vmatprep.subr.mxu0 0.0
      %2109 = vmatpush1.msra.mxu0 0.0
      %2110 = vmatprep.subr.mxu0 0.0
      %2111 = vmatpush1.msra.mxu0 0.0
      %2112 = vmatprep.mubr.f32.mxu0 0.0
      %2113 = vmatmul.mubr.f32.gmra.mrb[0].mxu0 %v2025
      %v2114 = vpop.f32.mrb[0].mxu0
      %v2115 = vadd.f32 %v2022, %v2114
      %v2116 = vpop.f32.mrb[0].mxu0
      %2117 = vmatprep.mubr.f32.mxu0 0.0
      %2118 = vmatmul.mubr.f32.gmra.mrb[0].mxu0 %v2028
      %v2119 = vpop.f32.mrb[0].mxu0
      %v2120 = vadd.f32 %v2022, %v2119
      %v2121 = vpop.f32.mrb[0].mxu0
      %2122 = vmatprep.mubr.f32.mxu0 0.0
      %2123 = vmatmul.mubr.f32.gmra.mrb[0].mxu0 %v2031
      %v2124 = vpop.f32.mrb[0].mxu0
      %v2125 = vadd.f32 %v2022, %v2124
      %v2126 = vpop.f32.mrb[0].mxu0
      %2127 = vmatprep.mubr.f32.mxu0 0.0
      %2128 = vmatmul.mubr.f32.gmra.mrb[0].mxu0 %v2034
      %v2129 = vpop.f32.mrb[0].mxu0
      %v2130 = vadd.f32 %v2022, %v2129
      %v2131 = vpop.f32.mrb[0].mxu0
      %2132 = vmatprep.mubr.f32.mxu0 0.0
      %2133 = vmatmul.mubr.f32.gmra.mrb[0].mxu0 %v2037
      %v2134 = vpop.f32.mrb[0].mxu0
      %v2135 = vadd.f32 %v2022, %v2134
      %v2136 = vpop.f32.mrb[0].mxu0
      %2137 = vmatprep.mubr.f32.mxu0 0.0
      %2138 = vmatmul.mubr.f32.gmra.mrb[0].mxu0 %v2040
      %v2139 = vpop.f32.mrb[0].mxu0
      %v2140 = vadd.f32 %v2022, %v2139
      %v2141 = vpop.f32.mrb[0].mxu0
      %2142 = vmatprep.mubr.f32.mxu0 0.0
      %2143 = vmatmul.mubr.f32.gmra.mrb[0].mxu0 %v2043
      %v2144 = vpop.f32.mrb[0].mxu0
      %v2145 = vadd.f32 %v2022, %v2144
      %v2146 = vpop.f32.mrb[0].mxu0
      %2147 = vmatprep.mubr.f32.mxu0 0.0
      %2148 = vmatmul.mubr.f32.gmra.mrb[0].mxu0 %v2046
      %v2149 = vpop.f32.mrb[0].mxu0
      %v2150 = vadd.f32 %v2022, %v2149
      %v2151 = vpop.f32.mrb[0].mxu0
      %2152 = vdwg.mxu0
      %v2153 = vsub.f32 0.0, %v2115
      %v2154 = vsub.f32 0.0, %v2120
      %v2155 = vsub.f32 0.0, %v2125
      %v2156 = vsub.f32 0.0, %v2130
      %v2157 = vsub.f32 0.0, %v2135
      %v2158 = vsub.f32 0.0, %v2140
      %v2159 = vsub.f32 0.0, %v2145
      %v2160 = vsub.f32 0.0, %v2150
      %v2161 = vmul.f32 %v2153, 1.442695
      %v2162 = vpow.pop %v2161
      %v2163 = vmul.f32 %v2154, 1.442695
      %v2164 = vpow.pop %v2163
      %v2165 = vmul.f32 %v2155, 1.442695
      %v2166 = vpow.pop %v2165
      %v2167 = vmul.f32 %v2156, 1.442695
      %v2168 = vpow.pop %v2167
      %v2169 = vmul.f32 %v2157, 1.442695
      %v2170 = vpow.pop %v2169
      %v2171 = vmul.f32 %v2158, 1.442695
      %v2172 = vpow.pop %v2171
      %v2173 = vmul.f32 %v2159, 1.442695
      %v2174 = vpow.pop %v2173
      %v2175 = vmul.f32 %v2160, 1.442695
      %v2176 = vpow.pop %v2175
      %v2177 = vadd.f32 %v2162, 1.0
      %v2178 = vadd.f32 %v2164, 1.0
      %v2179 = vadd.f32 %v2166, 1.0
      %v2180 = vadd.f32 %v2168, 1.0
      %v2181 = vadd.f32 %v2170, 1.0
      %v2182 = vadd.f32 %v2172, 1.0
      %v2183 = vadd.f32 %v2174, 1.0
      %v2184 = vadd.f32 %v2176, 1.0
      %v2185 = vrcp.pop %v2177
      %v2186 = vmul.f32 1.0, %v2185
      %v2187 = vrcp.pop %v2178
      %v2188 = vmul.f32 1.0, %v2187
      %v2189 = vrcp.pop %v2179
      %v2190 = vmul.f32 1.0, %v2189
      %v2191 = vrcp.pop %v2180
      %v2192 = vmul.f32 1.0, %v2191
      %v2193 = vrcp.pop %v2181
      %v2194 = vmul.f32 1.0, %v2193
      %v2195 = vrcp.pop %v2182
      %v2196 = vmul.f32 1.0, %v2195
      %v2197 = vrcp.pop %v2183
      %v2198 = vmul.f32 1.0, %v2197
      %v2199 = vrcp.pop %v2184
      %v2200 = vmul.f32 1.0, %v2199
      %vm2201 = vcmask 7168
      %2202 = vst.msk [vmem:[%s334] sm:$0xff] %vm2201, %v2186
      %2203 = vst.msk [vmem:[%s334 + $0x8] sm:$0xff] %vm2201, %v2188
      %2204 = vst.msk [vmem:[%s334 + $0x10] sm:$0xff] %vm2201, %v2190
      %2205 = vst.msk [vmem:[%s334 + $0x18] sm:$0xff] %vm2201, %v2192
      %2206 = vst.msk [vmem:[%s334 + $0x20] sm:$0xff] %vm2201, %v2194
      %2207 = vst.msk [vmem:[%s334 + $0x28] sm:$0xff] %vm2201, %v2196
      %2208 = vst.msk [vmem:[%s334 + $0x30] sm:$0xff] %vm2201, %v2198
      %2209 = vst.msk [vmem:[%s334 + $0x38] sm:$0xff] %vm2201, %v2200
      %s2210 = smul.u32 8, %s22
      %p2211 = scmp.lt.s32.totalorder %s2210, 15
      %s2212 = scalar_select %p2211, %s2210, 15
      %s2213 = smul.addr %s2212, 8
      %s2214 = scalar_lea.vmem %s9, %s2213
      // Predicated region
      $region57: #{tpu_custom_call.1} parent=55 // pred_check
        %p2215 = pneg %p234
      $region58: #{tpu_custom_call.1} parent=55 // pred_check_branch
        %2217 = sbr.rel (%p2215) target = $region60
      $region59: #{tpu_custom_call.1} parent=55 // pred_region
        %s2218 = smul.u32 8, %s22
      $region60: #{tpu_custom_call.1} parent=55 // pred_fallthru
        _
    $region56: #{tpu_custom_call.1} parent=5 // pred_fallthru
      _
    %p2219 = scmp.le.s32.totalorder 2, %s17
    // Predicated region
    $region61: #{tpu_custom_call.1} parent=5 // pred_check
      %p2220 = pneg %p2219
    $region62: #{tpu_custom_call.1} parent=5 // pred_check_branch
      %2222 = sbr.rel (%p2220) target = $region64
    $region63: #{tpu_custom_call.1} parent=5 // pred_region
      %s2223 = ssub.s32 %s17, 2
      // Predicated region
      $region65: #{tpu_custom_call.1} parent=63 // pred_check
        %p2224 = pneg %p240
      $region66: #{tpu_custom_call.1} parent=63 // pred_check_branch
        %2226 = sbr.rel (%p2224) target = $region68
      $region67: #{tpu_custom_call.1} parent=63 // pred_region
        %s2227 = smul.u32 8, %s23
        %p2228 = scmp.lt.s32.totalorder %s2227, 15
        %s2229 = scalar_select %p2228, %s2227, 15
        %s2230 = smul.addr %s2229, 8
        %s2231 = scalar_lea.vmem %s9, %s2230
      $region68: #{tpu_custom_call.1} parent=63 // pred_fallthru
        _
    $region64: #{tpu_custom_call.1} parent=5 // pred_fallthru
      _
  $region6: #{tpu_custom_call.1} parent=0 // loop_footer
    %s21 = sadd.s32 1, %s17
  $region7: #{tpu_custom_call.1} parent=0 // loop_footer_branch
    %16 = sbr.rel target = $region3
  $region8: #{tpu_custom_call.1} parent=0 // loop_exit
    _

</llo_original>
